<compile_context>
chip_gen: v5e
topology: v5e:2x2
jax: 0.10.0
libtpu: 0.0.40
codegen_flags: <defaults>
</compile_context>

<pallas_src>
import functools

import jax
import jax.numpy as jnp
from jax.experimental import pallas as pl
from jax.experimental.pallas import tpu as pltpu


def _conv_taps_kernel(x_ref, w_ref, b_ref, o_ref, *, k, w_pad, m_out):
    """One batch element: dense stride-1 conv over the padded, flattened image.

    x_ref: (1, L, C_in)        padded image, NHWC with (H_pad, W_pad) flattened
    w_ref: (k*k, C_out, C_in)  one (C_out, C_in) matrix per kernel tap (kh, kw)
    b_ref: (C_out, 1)
    o_ref: (1, C_out, M)       M = H_conv * W_pad (garbage columns trimmed by host)
    """
    c_out = o_ref.shape[1]
    acc = jnp.zeros((c_out, m_out), jnp.float32)
    for kh in range(k):
        for kw in range(k):
            off = kh * w_pad + kw
            # Shifted window, sliced on the sublane axis: (M, C_in).
            window = x_ref[0, off:off + m_out, :]
            # (C_out, C_in) x (M, C_in), contracting C_in -> (C_out, M):
            # keeps M on the lane axis (lane-dense accumulator and stores).
            acc += jax.lax.dot_general(
                w_ref[kh * k + kw], window,
                dimension_numbers=(((1,), (1,)), ((), ())),
                preferred_element_type=jnp.float32)
    o_ref[0] = (acc + b_ref[...]).astype(o_ref.dtype)


@functools.partial(jax.jit, static_argnames=("k", "s", "p"))
def conv_block_forward(x, weight, bias, *, k, s, p):
    """Equivalent of ConvBlock.forward (nn.Conv2d(in_c, out_c, k, stride=s, padding=p)).

    x:      [N, C_in, H, W]   (NCHW, like PyTorch)
    weight: [C_out, C_in, k, k]
    bias:   [C_out]
    returns [N, C_out, H_out, W_out] (NCHW)
    """
    n, c_in, h, w = x.shape
    c_out = weight.shape[0]

    h_pad, w_pad = h + 2 * p, w + 2 * p
    h_conv = h_pad - k + 1                      # stride-1 output height
    h_out = (h + 2 * p - k) // s + 1
    w_out = (w + 2 * p - k) // s + 1

    m_out = h_conv * w_pad                      # dense output cols (incl. W garbage)
    l_flat = h_pad * w_pad + (k - 1)            # farthest tap window stays in bounds

    # Single cheap layout pass over x (no k*k im2col expansion):
    # NCHW -> NHWC, spatial zero-pad, flatten (H_pad, W_pad) -> L.
    x_flat = jnp.transpose(x, (0, 2, 3, 1))
    x_flat = jnp.pad(x_flat, ((0, 0), (p, p), (p, p), (0, 0)))
    x_flat = x_flat.reshape(n, h_pad * w_pad, c_in)
    if l_flat > h_pad * w_pad:
        x_flat = jnp.pad(x_flat, ((0, 0), (0, l_flat - h_pad * w_pad), (0, 0)))

    # (C_out, C_in, k, k) -> (k*k, C_out, C_in): one tap matrix per (kh, kw).
    w_taps = jnp.transpose(weight, (2, 3, 0, 1)).reshape(k * k, c_out, c_in)
    b_col = bias.reshape(c_out, 1)

    dense = pl.pallas_call(
        functools.partial(_conv_taps_kernel, k=k, w_pad=w_pad, m_out=m_out),
        out_shape=jax.ShapeDtypeStruct((n, c_out, m_out), x.dtype),
        grid_spec=pltpu.PrefetchScalarGridSpec(
            num_scalar_prefetch=0,
            grid=(n,),
            in_specs=[
                pl.BlockSpec((1, l_flat, c_in), lambda i: (i, 0, 0)),
                pl.BlockSpec((k * k, c_out, c_in), lambda i: (0, 0, 0)),
                pl.BlockSpec((c_out, 1), lambda i: (0, 0)),
            ],
            out_specs=pl.BlockSpec((1, c_out, m_out), lambda i: (i, 0, 0)),
        ),
        compiler_params=pltpu.CompilerParams(
            dimension_semantics=("parallel",)),
    )(x_flat, w_taps, b_col)

    # (N, C_out, H_conv, W_pad): drop padding-garbage columns, apply stride.
    # No full-array transpose needed -- this is already NCHW-ordered.
    dense = dense.reshape(n, c_out, h_conv, w_pad)
    return dense[:, :, :(h_out - 1) * s + 1:s, :(w_out - 1) * s + 1:s]


if __name__ == "__main__":
    # ConvBlock(in_c=4, out_c=8, k=3, s=1, p=1)
    N, C_IN, H, W = 2, 4, 16, 16
    C_OUT, K, S, P = 8, 3, 1, 1

    key = jax.random.PRNGKey(0)
    kx, kwt, kb = jax.random.split(key, 3)
    x = jax.random.normal(kx, (N, C_IN, H, W), dtype=jnp.float32)
    # Deterministic init (shapes from nn.Conv2d(in_c, out_c, k)); values synthetic.
    fan_in = C_IN * K * K
    bound = 1.0 / (fan_in ** 0.5)
    weight = jax.random.uniform(kwt, (C_OUT, C_IN, K, K), jnp.float32, -bound, bound)
    bias = jax.random.uniform(kb, (C_OUT,), jnp.float32, -bound, bound)

    out = conv_block_forward(x, weight, bias, k=K, s=S, p=P)
    out = jax.block_until_ready(out)

    # Silent correctness check against XLA's conv.
    ref = jax.lax.conv_general_dilated(
        x, weight, window_strides=(S, S), padding=[(P, P), (P, P)],
        dimension_numbers=("NCHW", "OIHW", "NCHW"),
    ) + bias.reshape(1, C_OUT, 1, 1)
    assert out.shape == ref.shape
    assert jnp.allclose(out, ref, atol=1e-3, rtol=1e-3)

    print("KERNEL_OK")
</pallas_src>

<mosaic_0001>
module attributes {stable_mosaic.version = 11 : i64} {
  func.func @_conv_taps_kernel(%arg0: i32, %arg1: memref<1x326x4xf32, #tpu.memory_space<vmem>>, %arg2: memref<9x8x4xf32, #tpu.memory_space<vmem>>, %arg3: memref<8x1xf32, #tpu.memory_space<vmem>>, %arg4: memref<1x8x288xf32, #tpu.memory_space<vmem>>) attributes {dimension_semantics = [#tpu.dimension_semantics<parallel>], iteration_bounds = array<i64: 2>, scalar_prefetch = 0 : i64, scratch_operands = 0 : i64, tpu.core_type = #tpu.core_type<tc>, window_params = [{transform_indices = @transform_0, window_bounds = array<i64: 1, 326, 4>}, {pipeline_mode = #tpu.pipeline_mode<synchronous>, transform_indices = @transform_1, window_bounds = array<i64: 9, 8, 4>}, {pipeline_mode = #tpu.pipeline_mode<synchronous>, transform_indices = @transform_2, window_bounds = array<i64: 8, 1>}, {transform_indices = @transform_3, window_bounds = array<i64: 1, 8, 288>}]} {
    %cst = arith.constant 0.000000e+00 : f32
    %0 = vector.broadcast %cst : f32 to vector<8x288xf32>
    %c0 = arith.constant 0 : index
    %c0_0 = arith.constant 0 : index
    %c0_1 = arith.constant 0 : index
    %1 = vector.load %arg1[%c0, %c0_0, %c0_1] : memref<1x326x4xf32, #tpu.memory_space<vmem>>, vector<1x288x4xf32>
    %2 = vector.shape_cast %1 : vector<1x288x4xf32> to vector<288x4xf32>
    %c0_2 = arith.constant 0 : index
    %c0_3 = arith.constant 0 : index
    %c0_4 = arith.constant 0 : index
    %3 = vector.load %arg2[%c0_2, %c0_3, %c0_4] : memref<9x8x4xf32, #tpu.memory_space<vmem>>, vector<1x8x4xf32>
    %4 = vector.shape_cast %3 : vector<1x8x4xf32> to vector<8x4xf32>
    %cst_5 = arith.constant dense<0.000000e+00> : vector<8x288xf32>
    %5 = tpu.matmul %4, %2, %cst_5 {dimension_numbers = #tpu.dot_dimension_numbers<[1], [1], [0], [0], [0, 0, 1, 0], [], []>} : vector<8x4xf32>, vector<288x4xf32>, vector<8x288xf32> -> vector<8x288xf32>
    %6 = arith.addf %0, %5 : vector<8x288xf32>
    %c0_6 = arith.constant 0 : index
    %c1 = arith.constant 1 : index
    %c0_7 = arith.constant 0 : index
    %7 = vector.load %arg1[%c0_6, %c1, %c0_7] : memref<1x326x4xf32, #tpu.memory_space<vmem>>, vector<1x288x4xf32>
    %8 = vector.shape_cast %7 : vector<1x288x4xf32> to vector<288x4xf32>
    %c1_8 = arith.constant 1 : index
    %c0_9 = arith.constant 0 : index
    %c0_10 = arith.constant 0 : index
    %9 = vector.load %arg2[%c1_8, %c0_9, %c0_10] : memref<9x8x4xf32, #tpu.memory_space<vmem>>, vector<1x8x4xf32>
    %10 = vector.shape_cast %9 : vector<1x8x4xf32> to vector<8x4xf32>
    %cst_11 = arith.constant dense<0.000000e+00> : vector<8x288xf32>
    %11 = tpu.matmul %10, %8, %cst_11 {dimension_numbers = #tpu.dot_dimension_numbers<[1], [1], [0], [0], [0, 0, 1, 0], [], []>} : vector<8x4xf32>, vector<288x4xf32>, vector<8x288xf32> -> vector<8x288xf32>
    %12 = arith.addf %6, %11 : vector<8x288xf32>
    %c0_12 = arith.constant 0 : index
    %c2 = arith.constant 2 : index
    %c0_13 = arith.constant 0 : index
    %13 = vector.load %arg1[%c0_12, %c2, %c0_13] : memref<1x326x4xf32, #tpu.memory_space<vmem>>, vector<1x288x4xf32>
    %14 = vector.shape_cast %13 : vector<1x288x4xf32> to vector<288x4xf32>
    %c2_14 = arith.constant 2 : index
    %c0_15 = arith.constant 0 : index
    %c0_16 = arith.constant 0 : index
    %15 = vector.load %arg2[%c2_14, %c0_15, %c0_16] : memref<9x8x4xf32, #tpu.memory_space<vmem>>, vector<1x8x4xf32>
    %16 = vector.shape_cast %15 : vector<1x8x4xf32> to vector<8x4xf32>
    %cst_17 = arith.constant dense<0.000000e+00> : vector<8x288xf32>
    %17 = tpu.matmul %16, %14, %cst_17 {dimension_numbers = #tpu.dot_dimension_numbers<[1], [1], [0], [0], [0, 0, 1, 0], [], []>} : vector<8x4xf32>, vector<288x4xf32>, vector<8x288xf32> -> vector<8x288xf32>
    %18 = arith.addf %12, %17 : vector<8x288xf32>
    %c0_18 = arith.constant 0 : index
    %c18 = arith.constant 18 : index
    %c0_19 = arith.constant 0 : index
    %19 = vector.load %arg1[%c0_18, %c18, %c0_19] : memref<1x326x4xf32, #tpu.memory_space<vmem>>, vector<1x288x4xf32>
    %20 = vector.shape_cast %19 : vector<1x288x4xf32> to vector<288x4xf32>
    %c3 = arith.constant 3 : index
    %c0_20 = arith.constant 0 : index
    %c0_21 = arith.constant 0 : index
    %21 = vector.load %arg2[%c3, %c0_20, %c0_21] : memref<9x8x4xf32, #tpu.memory_space<vmem>>, vector<1x8x4xf32>
    %22 = vector.shape_cast %21 : vector<1x8x4xf32> to vector<8x4xf32>
    %cst_22 = arith.constant dense<0.000000e+00> : vector<8x288xf32>
    %23 = tpu.matmul %22, %20, %cst_22 {dimension_numbers = #tpu.dot_dimension_numbers<[1], [1], [0], [0], [0, 0, 1, 0], [], []>} : vector<8x4xf32>, vector<288x4xf32>, vector<8x288xf32> -> vector<8x288xf32>
    %24 = arith.addf %18, %23 : vector<8x288xf32>
    %c0_23 = arith.constant 0 : index
    %c19 = arith.constant 19 : index
    %c0_24 = arith.constant 0 : index
    %25 = vector.load %arg1[%c0_23, %c19, %c0_24] : memref<1x326x4xf32, #tpu.memory_space<vmem>>, vector<1x288x4xf32>
    %26 = vector.shape_cast %25 : vector<1x288x4xf32> to vector<288x4xf32>
    %c4 = arith.constant 4 : index
    %c0_25 = arith.constant 0 : index
    %c0_26 = arith.constant 0 : index
    %27 = vector.load %arg2[%c4, %c0_25, %c0_26] : memref<9x8x4xf32, #tpu.memory_space<vmem>>, vector<1x8x4xf32>
    %28 = vector.shape_cast %27 : vector<1x8x4xf32> to vector<8x4xf32>
    %cst_27 = arith.constant dense<0.000000e+00> : vector<8x288xf32>
    %29 = tpu.matmul %28, %26, %cst_27 {dimension_numbers = #tpu.dot_dimension_numbers<[1], [1], [0], [0], [0, 0, 1, 0], [], []>} : vector<8x4xf32>, vector<288x4xf32>, vector<8x288xf32> -> vector<8x288xf32>
    %30 = arith.addf %24, %29 : vector<8x288xf32>
    %c0_28 = arith.constant 0 : index
    %c20 = arith.constant 20 : index
    %c0_29 = arith.constant 0 : index
    %31 = vector.load %arg1[%c0_28, %c20, %c0_29] : memref<1x326x4xf32, #tpu.memory_space<vmem>>, vector<1x288x4xf32>
    %32 = vector.shape_cast %31 : vector<1x288x4xf32> to vector<288x4xf32>
    %c5 = arith.constant 5 : index
    %c0_30 = arith.constant 0 : index
    %c0_31 = arith.constant 0 : index
    %33 = vector.load %arg2[%c5, %c0_30, %c0_31] : memref<9x8x4xf32, #tpu.memory_space<vmem>>, vector<1x8x4xf32>
    %34 = vector.shape_cast %33 : vector<1x8x4xf32> to vector<8x4xf32>
    %cst_32 = arith.constant dense<0.000000e+00> : vector<8x288xf32>
    %35 = tpu.matmul %34, %32, %cst_32 {dimension_numbers = #tpu.dot_dimension_numbers<[1], [1], [0], [0], [0, 0, 1, 0], [], []>} : vector<8x4xf32>, vector<288x4xf32>, vector<8x288xf32> -> vector<8x288xf32>
    %36 = arith.addf %30, %35 : vector<8x288xf32>
    %c0_33 = arith.constant 0 : index
    %c36 = arith.constant 36 : index
    %c0_34 = arith.constant 0 : index
    %37 = vector.load %arg1[%c0_33, %c36, %c0_34] : memref<1x326x4xf32, #tpu.memory_space<vmem>>, vector<1x288x4xf32>
    %38 = vector.shape_cast %37 : vector<1x288x4xf32> to vector<288x4xf32>
    %c6 = arith.constant 6 : index
    %c0_35 = arith.constant 0 : index
    %c0_36 = arith.constant 0 : index
    %39 = vector.load %arg2[%c6, %c0_35, %c0_36] : memref<9x8x4xf32, #tpu.memory_space<vmem>>, vector<1x8x4xf32>
    %40 = vector.shape_cast %39 : vector<1x8x4xf32> to vector<8x4xf32>
    %cst_37 = arith.constant dense<0.000000e+00> : vector<8x288xf32>
    %41 = tpu.matmul %40, %38, %cst_37 {dimension_numbers = #tpu.dot_dimension_numbers<[1], [1], [0], [0], [0, 0, 1, 0], [], []>} : vector<8x4xf32>, vector<288x4xf32>, vector<8x288xf32> -> vector<8x288xf32>
    %42 = arith.addf %36, %41 : vector<8x288xf32>
    %c0_38 = arith.constant 0 : index
    %c37 = arith.constant 37 : index
    %c0_39 = arith.constant 0 : index
    %43 = vector.load %arg1[%c0_38, %c37, %c0_39] : memref<1x326x4xf32, #tpu.memory_space<vmem>>, vector<1x288x4xf32>
    %44 = vector.shape_cast %43 : vector<1x288x4xf32> to vector<288x4xf32>
    %c7 = arith.constant 7 : index
    %c0_40 = arith.constant 0 : index
    %c0_41 = arith.constant 0 : index
    %45 = vector.load %arg2[%c7, %c0_40, %c0_41] : memref<9x8x4xf32, #tpu.memory_space<vmem>>, vector<1x8x4xf32>
    %46 = vector.shape_cast %45 : vector<1x8x4xf32> to vector<8x4xf32>
    %cst_42 = arith.constant dense<0.000000e+00> : vector<8x288xf32>
    %47 = tpu.matmul %46, %44, %cst_42 {dimension_numbers = #tpu.dot_dimension_numbers<[1], [1], [0], [0], [0, 0, 1, 0], [], []>} : vector<8x4xf32>, vector<288x4xf32>, vector<8x288xf32> -> vector<8x288xf32>
    %48 = arith.addf %42, %47 : vector<8x288xf32>
    %c0_43 = arith.constant 0 : index
    %c38 = arith.constant 38 : index
    %c0_44 = arith.constant 0 : index
    %49 = vector.load %arg1[%c0_43, %c38, %c0_44] : memref<1x326x4xf32, #tpu.memory_space<vmem>>, vector<1x288x4xf32>
    %50 = vector.shape_cast %49 : vector<1x288x4xf32> to vector<288x4xf32>
    %c8 = arith.constant 8 : index
    %c0_45 = arith.constant 0 : index
    %c0_46 = arith.constant 0 : index
    %51 = vector.load %arg2[%c8, %c0_45, %c0_46] : memref<9x8x4xf32, #tpu.memory_space<vmem>>, vector<1x8x4xf32>
    %52 = vector.shape_cast %51 : vector<1x8x4xf32> to vector<8x4xf32>
    %cst_47 = arith.constant dense<0.000000e+00> : vector<8x288xf32>
    %53 = tpu.matmul %52, %50, %cst_47 {dimension_numbers = #tpu.dot_dimension_numbers<[1], [1], [0], [0], [0, 0, 1, 0], [], []>} : vector<8x4xf32>, vector<288x4xf32>, vector<8x288xf32> -> vector<8x288xf32>
    %54 = arith.addf %48, %53 : vector<8x288xf32>
    %c0_48 = arith.constant 0 : index
    %c0_49 = arith.constant 0 : index
    %55 = vector.load %arg3[%c0_48, %c0_49] : memref<8x1xf32, #tpu.memory_space<vmem>>, vector<8x1xf32>
    %56 = vector.broadcast %55 : vector<8x1xf32> to vector<8x288xf32>
    %57 = arith.addf %54, %56 : vector<8x288xf32>
    %c0_50 = arith.constant 0 : index
    %c0_51 = arith.constant 0 : index
    %c0_52 = arith.constant 0 : index
    %58 = vector.load %arg4[%c0_50, %c0_51, %c0_52] : memref<1x8x288xf32, #tpu.memory_space<vmem>>, vector<1x8x288xf32>
    %59 = vector.shape_cast %58 : vector<1x8x288xf32> to vector<8x288xf32>
    %60 = vector.shape_cast %57 : vector<8x288xf32> to vector<1x8x288xf32>
    tpu.vector_store %arg4[%c0_50, %c0_51, %c0_52], %60 {strides = array<i32>} : memref<1x8x288xf32, #tpu.memory_space<vmem>>, vector<1x8x288xf32>,
    return
  }
  func.func @transform_0(%arg0: i32) -> (i32, i32, i32) {
    %c0_i32 = arith.constant 0 : i32
    %c0_i32_0 = arith.constant 0 : i32
    %c0_i32_1 = arith.constant 0 : i32
    return %arg0, %c0_i32, %c0_i32_0 : i32, i32, i32
  }
  func.func @transform_1(%arg0: i32) -> (i32, i32, i32) {
    %c0_i32 = arith.constant 0 : i32
    %c0_i32_0 = arith.constant 0 : i32
    %c0_i32_1 = arith.constant 0 : i32
    %c0_i32_2 = arith.constant 0 : i32
    return %c0_i32, %c0_i32_0, %c0_i32_1 : i32, i32, i32
  }
  func.func @transform_2(%arg0: i32) -> (i32, i32) {
    %c0_i32 = arith.constant 0 : i32
    %c0_i32_0 = arith.constant 0 : i32
    %c0_i32_1 = arith.constant 0 : i32
    return %c0_i32, %c0_i32_0 : i32, i32
  }
  func.func @transform_3(%arg0: i32) -> (i32, i32, i32) {
    %c0_i32 = arith.constant 0 : i32
    %c0_i32_0 = arith.constant 0 : i32
    %c0_i32_1 = arith.constant 0 : i32
    return %arg0, %c0_i32, %c0_i32_0 : i32, i32, i32
  }
}

</mosaic_0001>

<llo_original>
// kernel: conv_block_forward.1
$region0: #{conv_block_forward.1}
  #allocation0 [shape = 'u32[]', space=smem, size = 0x4, offset = 0x4, fixed_abs, tag = 'smem constant byte address 0x4 - core index']
  #allocation1 [shape = 'u32[72,128]{1,0:T(1,128)}', space=vmem, size = 0x9000, scoped, tag = 'internal scratch']
  %s0 = inlined_call_operand.vmem [shape: f32[2,326,4], index: 0, kind: input, shape index: {}]
  %s1 = inlined_call_operand.vmem [shape: f32[9,8,4], index: 1, kind: input, shape index: {}]
  %s2 = inlined_call_operand.vmem [shape: f32[8,1], index: 2, kind: input, shape index: {}]
  %s3 = inlined_call_operand.vmem [shape: f32[2,8,288], index: 3, kind: output, shape index: {}]
  %s4 = sld [smem:[#allocation0]]
  $region45: #{conv_block_forward.1} parent=0
    _
  %s6 = ssub.s32 1, %s4
  %s7 = scalar_select 0, %s6, %s4
  loop: start=0, step=1, limit=4
  $region2: #{conv_block_forward.1} parent=0 // loop_pre_header
    _
  $region3: #{conv_block_forward.1} parent=0 // loop_header
    %s9 = sphi 0, %s13
    %p10 = scmp.ge.s32.totalorder %s9, 4
    %s19 = sphi 0, %s21
    %s22 = sphi 0, %s19
    %s23 = sphi 0, %s22
    %s39 = sphi 0, %s23
    %s43 = sphi 0, %s43
    %s45 = sphi 0, %s43
    %s46 = sphi 0, %s45
    %s60 = sphi 0, %s46
    %s64 = sphi 0, %s64
    %s66 = sphi 0, %s64
    %s67 = sphi 0, %s66
    %s81 = sphi 0, %s67
    %s87 = sphi 0, %s89
    %s90 = sphi 0, %s87
    %s91 = sphi 0, %s90
    %s107 = sphi 0, %s91
  $region4: #{conv_block_forward.1} parent=0 // loop_header_branch
    %12 = sbr.rel (%p10) target = $region8
  $region5: #{conv_block_forward.1} parent=0 // loop_body
    %s14 = ssub.s32 %s9, 1
    %s15 = ssub.s32 %s9, 2
    %s16 = sadd.s32 %s9, 1
    %s17 = ssub.s32 %s9, %s16
    %p18 = scmp.eq.s32.totalorder %s17, 0
    %s20 = sadd.s32 %s19, 1
    %s21 = scalar_select %p18, %s19, %s20
    %p24 = pneg %p18
    %p25 = scmp.eq.s32.totalorder %s9, 1
    %p26 = por %p24, %p25
    %p27 = scmp.ne.s32.totalorder %s19, %s22
    %p28 = scmp.eq.s32.totalorder %s9, 0
    %p29 = por %p27, %p28
    %p30 = scmp.ne.s32.totalorder %s19, %s22
    %p31 = scmp.eq.s32.totalorder %s14, 1
    %p32 = por %p30, %p31
    %p33 = scmp.ne.s32.totalorder %s22, %s23
    %p34 = scmp.eq.s32.totalorder %s14, 0
    %p35 = por %p33, %p34
    %p36 = scmp.ne.s32.totalorder %s22, %s23
    %p37 = scmp.eq.s32.totalorder %s15, 1
    %p38 = por %p36, %p37
    %p40 = scmp.ne.s32.totalorder %s23, %s39
    %p41 = scmp.eq.s32.totalorder %s15, 0
    %p42 = por %p40, %p41
    %s44 = sadd.s32 %s43, 1
    %p47 = scmp.eq.s32.totalorder %s9, 1
    %p48 = scmp.ne.s32.totalorder %s43, %s45
    %p49 = scmp.eq.s32.totalorder %s9, 0
    %p50 = por %p48, %p49
    %p51 = scmp.ne.s32.totalorder %s43, %s45
    %p52 = scmp.eq.s32.totalorder %s14, 1
    %p53 = por %p51, %p52
    %p54 = scmp.ne.s32.totalorder %s45, %s46
    %p55 = scmp.eq.s32.totalorder %s14, 0
    %p56 = por %p54, %p55
    %p57 = scmp.ne.s32.totalorder %s45, %s46
    %p58 = scmp.eq.s32.totalorder %s15, 1
    %p59 = por %p57, %p58
    %p61 = scmp.ne.s32.totalorder %s46, %s60
    %p62 = scmp.eq.s32.totalorder %s15, 0
    %p63 = por %p61, %p62
    %s65 = sadd.s32 %s64, 1
    %p68 = scmp.eq.s32.totalorder %s9, 1
    %p69 = scmp.ne.s32.totalorder %s64, %s66
    %p70 = scmp.eq.s32.totalorder %s9, 0
    %p71 = por %p69, %p70
    %p72 = scmp.ne.s32.totalorder %s64, %s66
    %p73 = scmp.eq.s32.totalorder %s14, 1
    %p74 = por %p72, %p73
    %p75 = scmp.ne.s32.totalorder %s66, %s67
    %p76 = scmp.eq.s32.totalorder %s14, 0
    %p77 = por %p75, %p76
    %p78 = scmp.ne.s32.totalorder %s66, %s67
    %p79 = scmp.eq.s32.totalorder %s15, 1
    %p80 = por %p78, %p79
    %p82 = scmp.ne.s32.totalorder %s67, %s81
    %p83 = scmp.eq.s32.totalorder %s15, 0
    %p84 = por %p82, %p83
    %s85 = ssub.s32 %s9, %s16
    %p86 = scmp.eq.s32.totalorder %s85, 0
    %s88 = sadd.s32 %s87, 1
    %s89 = scalar_select %p86, %s87, %s88
    %p92 = pneg %p86
    %p93 = scmp.eq.s32.totalorder %s9, 1
    %p94 = por %p92, %p93
    %p95 = scmp.ne.s32.totalorder %s87, %s90
    %p96 = scmp.eq.s32.totalorder %s9, 0
    %p97 = por %p95, %p96
    %p98 = scmp.ne.s32.totalorder %s87, %s90
    %p99 = scmp.eq.s32.totalorder %s14, 1
    %p100 = por %p98, %p99
    %p101 = scmp.ne.s32.totalorder %s90, %s91
    %p102 = scmp.eq.s32.totalorder %s14, 0
    %p103 = por %p101, %p102
    %p104 = scmp.ne.s32.totalorder %s90, %s91
    %p105 = scmp.eq.s32.totalorder %s15, 1
    %p106 = por %p104, %p105
    %p108 = scmp.ne.s32.totalorder %s91, %s107
    %p109 = scmp.eq.s32.totalorder %s15, 0
    %p110 = por %p108, %p109
    %p111 = scmp.le.s32.totalorder 1, %s9
    %p112 = scmp.lt.s32.totalorder %s9, 3
    %p113 = pnand %p111, %p112
    %p114 = pneg %p113
    // Predicated region
    $region9: #{conv_block_forward.1} parent=5 // pred_check
      _
    $region10: #{conv_block_forward.1} parent=5 // pred_check_branch
      %116 = sbr.rel (%p113) target = $region12
    $region11: #{conv_block_forward.1} parent=5 // pred_region
      %s117 = ssub.s32 %s9, 1
      // Predicated region
      $region13: #{conv_block_forward.1} parent=11 // pred_check
        %p118 = pneg %p56
      $region14: #{conv_block_forward.1} parent=11 // pred_check_branch
        %120 = sbr.rel (%p118) target = $region16
      $region15: #{conv_block_forward.1} parent=11 // pred_region
        _
      $region16: #{conv_block_forward.1} parent=11 // pred_fallthru
        _
      // Predicated region
      $region17: #{conv_block_forward.1} parent=11 // pred_check
        %p121 = pneg %p77
      $region18: #{conv_block_forward.1} parent=11 // pred_check_branch
        %123 = sbr.rel (%p121) target = $region20
      $region19: #{conv_block_forward.1} parent=11 // pred_region
        _
      $region20: #{conv_block_forward.1} parent=11 // pred_fallthru
        _
    $region12: #{conv_block_forward.1} parent=5 // pred_fallthru
      _
    %p124 = scmp.lt.s32.totalorder %s9, 2
    // Predicated region
    $region21: #{conv_block_forward.1} parent=5 // pred_check
      %p125 = pneg %p124
    $region22: #{conv_block_forward.1} parent=5 // pred_check_branch
      %127 = sbr.rel (%p125) target = $region24
    $region23: #{conv_block_forward.1} parent=5 // pred_region
      // Predicated region
      $region25: #{conv_block_forward.1} parent=23 // pred_check
        %p128 = pneg %p29
      $region26: #{conv_block_forward.1} parent=23 // pred_check_branch
        %130 = sbr.rel (%p128) target = $region28
      $region27: #{conv_block_forward.1} parent=23 // pred_region
        %p131 = scmp.lt.s32.totalorder %s9, 1
        %s132 = scalar_select %p131, %s9, 1
        %s133 = smul.addr %s132, 41
        %s134 = smul.addr %s133, 8
        %s135 = scalar_lea.vmem %s0, %s134
      $region28: #{conv_block_forward.1} parent=23 // pred_fallthru
        _
    $region24: #{conv_block_forward.1} parent=5 // pred_fallthru
      _
    %p136 = scmp.le.s32.totalorder 1, %s9
    %p137 = scmp.lt.s32.totalorder %s9, 3
    %p138 = pnand %p136, %p137
    %p139 = pneg %p138
    // Predicated region
    $region29: #{conv_block_forward.1} parent=5 // pred_check
      _
    $region30: #{conv_block_forward.1} parent=5 // pred_check_branch
      %141 = sbr.rel (%p138) target = $region32
    $region31: #{conv_block_forward.1} parent=5 // pred_region
      %s142 = ssub.s32 %s9, 1
      %p143 = scmp.lt.s32.totalorder %s14, 1
      %s144 = scalar_select %p143, %s14, 1
      %s145 = smul.addr %s144, 41
      %s146 = smul.addr %s145, 8
      %s147 = scalar_lea.vmem %s0, %s146
      %p148 = pneg %p35
      %p149 = pneg %p32
      %p150 = pneg %p56
      %p151 = pneg %p53
      %p152 = pneg %p77
      %p153 = pneg %p74
      %p154 = pneg %p103
      %p155 = pneg %p100
      %p156 = scmp.lt.s32.totalorder %s14, 1
      %s157 = scalar_select %p156, %s14, 1
      %s158 = smul.addr %s157, 3
      %s159 = smul.addr %s158, 8
      %s160 = scalar_lea.vmem %s3, %s159
      %p161 = scmp.lt.s32.totalorder %s14, 1
      %s162 = scalar_select %p161, %s14, 1
      %s163 = smul.addr %s162, 41
      %s164 = smul.addr %s163, 8
      %s165 = scalar_lea.vmem %s0, %s164
      %p166 = scmp.lt.s32.totalorder %s14, 1
      %s167 = scalar_select %p166, %s14, 1
      %s168 = smul.addr %s167, 3
      %s169 = smul.addr %s168, 8
      %s170 = scalar_lea.vmem %s3, %s169
      %v171 = vld [vmem:[%s165] sm:$0xff]
      %v172 = vld [vmem:[%s165 + $0x8] sm:$0xff]
      %v173 = vld [vmem:[%s165 + $0x10] sm:$0xff]
      %v174 = vld [vmem:[%s165 + $0x18] sm:$0xff]
      %v175 = vld [vmem:[%s165 + $0x20] sm:$0xff]
      %v176 = vld [vmem:[%s165 + $0x28] sm:$0xff]
      %v177 = vld [vmem:[%s165 + $0x30] sm:$0xff]
      %v178 = vld [vmem:[%s165 + $0x38] sm:$0xff]
      %v179 = vld [vmem:[%s165 + $0x40] sm:$0xff]
      %v180 = vld [vmem:[%s165 + $0x48] sm:$0xff]
      %v181 = vld [vmem:[%s165 + $0x50] sm:$0xff]
      %v182 = vld [vmem:[%s165 + $0x58] sm:$0xff]
      %v183 = vld [vmem:[%s165 + $0x60] sm:$0xff]
      %v184 = vld [vmem:[%s165 + $0x68] sm:$0xff]
      %v185 = vld [vmem:[%s165 + $0x70] sm:$0xff]
      %v186 = vld [vmem:[%s165 + $0x78] sm:$0xff]
      %v187 = vld [vmem:[%s165 + $0x80] sm:$0xff]
      %v188 = vld [vmem:[%s165 + $0x88] sm:$0xff]
      %v189 = vld [vmem:[%s165 + $0x90] sm:$0xff]
      %v190 = vld [vmem:[%s165 + $0x98] sm:$0xff]
      %v191 = vld [vmem:[%s165 + $0xa0] sm:$0xff]
      %v192 = vld [vmem:[%s165 + $0xa8] sm:$0xff]
      %v193 = vld [vmem:[%s165 + $0xb0] sm:$0xff]
      %v194 = vld [vmem:[%s165 + $0xb8] sm:$0xff]
      %v195 = vld [vmem:[%s165 + $0xc0] sm:$0xff]
      %v196 = vld [vmem:[%s165 + $0xc8] sm:$0xff]
      %v197 = vld [vmem:[%s165 + $0xd0] sm:$0xff]
      %v198 = vld [vmem:[%s165 + $0xd8] sm:$0xff]
      %v199 = vld [vmem:[%s165 + $0xe0] sm:$0xff]
      %v200 = vld [vmem:[%s165 + $0xe8] sm:$0xff]
      %v201 = vld [vmem:[%s165 + $0xf0] sm:$0xff]
      %v202 = vld [vmem:[%s165 + $0xf8] sm:$0xff]
      %v203 = vld [vmem:[%s165 + $0x100] sm:$0xff]
      %v204 = vld [vmem:[%s165 + $0x108] sm:$0xff]
      %v205 = vld [vmem:[%s165 + $0x110] sm:$0xff]
      %v206 = vld [vmem:[%s165 + $0x118] sm:$0xff]
      %v207 = vld [vmem:[%s1] sm:$0xff]
      %v208 = vld [vmem:[%s165 + $0x1] sm:$0xff]
      %v209 = vld [vmem:[%s165 + $0x9] sm:$0xff]
      %v210 = vld [vmem:[%s165 + $0x11] sm:$0xff]
      %v211 = vld [vmem:[%s165 + $0x19] sm:$0xff]
      %v212 = vld [vmem:[%s165 + $0x21] sm:$0xff]
      %v213 = vld [vmem:[%s165 + $0x29] sm:$0xff]
      %v214 = vld [vmem:[%s165 + $0x31] sm:$0xff]
      %v215 = vld [vmem:[%s165 + $0x39] sm:$0xff]
      %v216 = vld [vmem:[%s165 + $0x41] sm:$0xff]
      %v217 = vld [vmem:[%s165 + $0x49] sm:$0xff]
      %v218 = vld [vmem:[%s165 + $0x51] sm:$0xff]
      %v219 = vld [vmem:[%s165 + $0x59] sm:$0xff]
      %v220 = vld [vmem:[%s165 + $0x61] sm:$0xff]
      %v221 = vld [vmem:[%s165 + $0x69] sm:$0xff]
      %v222 = vld [vmem:[%s165 + $0x71] sm:$0xff]
      %v223 = vld [vmem:[%s165 + $0x79] sm:$0xff]
      %v224 = vld [vmem:[%s165 + $0x81] sm:$0xff]
      %v225 = vld [vmem:[%s165 + $0x89] sm:$0xff]
      %v226 = vld [vmem:[%s165 + $0x91] sm:$0xff]
      %v227 = vld [vmem:[%s165 + $0x99] sm:$0xff]
      %v228 = vld [vmem:[%s165 + $0xa1] sm:$0xff]
      %v229 = vld [vmem:[%s165 + $0xa9] sm:$0xff]
      %v230 = vld [vmem:[%s165 + $0xb1] sm:$0xff]
      %v231 = vld [vmem:[%s165 + $0xb9] sm:$0xff]
      %v232 = vld [vmem:[%s165 + $0xc1] sm:$0xff]
      %v233 = vld [vmem:[%s165 + $0xc9] sm:$0xff]
      %v234 = vld [vmem:[%s165 + $0xd1] sm:$0xff]
      %v235 = vld [vmem:[%s165 + $0xd9] sm:$0xff]
      %v236 = vld [vmem:[%s165 + $0xe1] sm:$0xff]
      %v237 = vld [vmem:[%s165 + $0xe9] sm:$0xff]
      %v238 = vld [vmem:[%s165 + $0xf1] sm:$0xff]
      %v239 = vld [vmem:[%s165 + $0xf9] sm:$0xff]
      %v240 = vld [vmem:[%s165 + $0x101] sm:$0xff]
      %v241 = vld [vmem:[%s165 + $0x109] sm:$0xff]
      %v242 = vld [vmem:[%s165 + $0x111] sm:$0xff]
      %v243 = vld [vmem:[%s165 + $0x119] sm:$0xff]
      %s244 = scalar_lea.vmem %s1, 8
      %v245 = vld [vmem:[%s244] sm:$0xff]
      %vm246 = vcmask 31744
      %v248 = vsel %vm246, %v245, 0
      %v251 = vsel %vm246, %v208, 0
      %v254 = vsel %vm246, %v209, 0
      %v257 = vsel %vm246, %v210, 0
      %v260 = vsel %vm246, %v211, 0
      %v263 = vsel %vm246, %v212, 0
      %v266 = vsel %vm246, %v213, 0
      %v269 = vsel %vm246, %v214, 0
      %v272 = vsel %vm246, %v215, 0
      %v275 = vsel %vm246, %v216, 0
      %v278 = vsel %vm246, %v217, 0
      %v281 = vsel %vm246, %v218, 0
      %v284 = vsel %vm246, %v219, 0
      %v287 = vsel %vm246, %v220, 0
      %v290 = vsel %vm246, %v221, 0
      %v293 = vsel %vm246, %v222, 0
      %v296 = vsel %vm246, %v223, 0
      %v299 = vsel %vm246, %v224, 0
      %v302 = vsel %vm246, %v225, 0
      %v305 = vsel %vm246, %v226, 0
      %v308 = vsel %vm246, %v227, 0
      %v311 = vsel %vm246, %v228, 0
      %v314 = vsel %vm246, %v229, 0
      %v317 = vsel %vm246, %v230, 0
      %v320 = vsel %vm246, %v231, 0
      %v323 = vsel %vm246, %v232, 0
      %v326 = vsel %vm246, %v233, 0
      %v329 = vsel %vm246, %v234, 0
      %v332 = vsel %vm246, %v235, 0
      %v335 = vsel %vm246, %v236, 0
      %v338 = vsel %vm246, %v237, 0
      %v341 = vsel %vm246, %v238, 0
      %v344 = vsel %vm246, %v239, 0
      %v347 = vsel %vm246, %v240, 0
      %v350 = vsel %vm246, %v241, 0
      %v353 = vsel %vm246, %v242, 0
      %v356 = vsel %vm246, %v243, 0
      %358 = vmatpush.xpose.msra.mxu0 %v296
      %359 = vmatpush.xpose.msra.mxu0 %v293
      %360 = vmatpush.xpose.msra.mxu0 %v290
      %361 = vmatpush.xpose.msra.mxu0 %v287
      %362 = vmatpush.xpose.msra.mxu0 %v284
      %363 = vmatpush.xpose.msra.mxu0 %v281
      %364 = vmatpush.xpose.msra.mxu0 %v278
      %365 = vmatpush.xpose.msra.mxu0 %v275
      %366 = vmatpush.xpose.msra.mxu0 %v272
      %367 = vmatpush.xpose.msra.mxu0 %v269
      %368 = vmatpush.xpose.msra.mxu0 %v266
      %369 = vmatpush.xpose.msra.mxu0 %v263
      %370 = vmatpush.xpose.msra.mxu0 %v260
      %371 = vmatpush.xpose.msra.mxu0 %v257
      %372 = vmatpush.xpose.msra.mxu0 %v254
      %373 = vmatpush.xpose.msra.mxu0 %v251
      %374 = vmatmul.f32.gmra.mxu0 %v248
      %v375 = vpop.f32.mrf.mxu0
      %v376 = vadd.f32 0.0, %v375
      %377 = vdwg.mxu0
      %378 = vmatpush.xpose.msra.mxu0 %v344
      %379 = vmatpush.xpose.msra.mxu0 %v341
      %380 = vmatpush.xpose.msra.mxu0 %v338
      %381 = vmatpush.xpose.msra.mxu0 %v335
      %382 = vmatpush.xpose.msra.mxu0 %v332
      %383 = vmatpush.xpose.msra.mxu0 %v329
      %384 = vmatpush.xpose.msra.mxu0 %v326
      %385 = vmatpush.xpose.msra.mxu0 %v323
      %386 = vmatpush.xpose.msra.mxu0 %v320
      %387 = vmatpush.xpose.msra.mxu0 %v317
      %388 = vmatpush.xpose.msra.mxu0 %v314
      %389 = vmatpush.xpose.msra.mxu0 %v311
      %390 = vmatpush.xpose.msra.mxu0 %v308
      %391 = vmatpush.xpose.msra.mxu0 %v305
      %392 = vmatpush.xpose.msra.mxu0 %v302
      %393 = vmatpush.xpose.msra.mxu0 %v299
      %394 = vmatmul.f32.gmra.mxu0 %v248
      %v395 = vpop.f32.mrf.mxu0
      %v396 = vadd.f32 0.0, %v395
      %397 = vdwg.mxu0
      %398 = vmatpush.xpose.msra.mxu0 0.0
      %399 = vmatpush.xpose.msra.mxu0 0.0
      %400 = vmatpush.xpose.msra.mxu0 0.0
      %401 = vmatpush.xpose.msra.mxu0 0.0
      %402 = vmatpush.xpose.msra.mxu0 0.0
      %403 = vmatpush.xpose.msra.mxu0 0.0
      %404 = vmatpush.xpose.msra.mxu0 0.0
      %405 = vmatpush.xpose.msra.mxu0 0.0
      %406 = vmatpush.xpose.msra.mxu0 0.0
      %407 = vmatpush.xpose.msra.mxu0 0.0
      %408 = vmatpush.xpose.msra.mxu0 0.0
      %409 = vmatpush.xpose.msra.mxu0 0.0
      %410 = vmatpush.xpose.msra.mxu0 %v356
      %411 = vmatpush.xpose.msra.mxu0 %v353
      %412 = vmatpush.xpose.msra.mxu0 %v350
      %413 = vmatpush.xpose.msra.mxu0 %v347
      %414 = vmatmul.f32.gmra.mxu0 %v248
      %v415 = vpop.f32.mrf.mxu0
      %v416 = vadd.f32 0.0, %v415
      %417 = vdwg.mxu0
      %v419 = vsel %vm246, %v207, 0
      %v422 = vsel %vm246, %v171, 0
      %v425 = vsel %vm246, %v172, 0
      %v428 = vsel %vm246, %v173, 0
      %v431 = vsel %vm246, %v174, 0
      %v434 = vsel %vm246, %v175, 0
      %v437 = vsel %vm246, %v176, 0
      %v440 = vsel %vm246, %v177, 0
      %v443 = vsel %vm246, %v178, 0
      %v446 = vsel %vm246, %v179, 0
      %v449 = vsel %vm246, %v180, 0
      %v452 = vsel %vm246, %v181, 0
      %v455 = vsel %vm246, %v182, 0
      %v458 = vsel %vm246, %v183, 0
      %v461 = vsel %vm246, %v184, 0
      %v464 = vsel %vm246, %v185, 0
      %v467 = vsel %vm246, %v186, 0
      %v470 = vsel %vm246, %v187, 0
      %v473 = vsel %vm246, %v188, 0
      %v476 = vsel %vm246, %v189, 0
      %v479 = vsel %vm246, %v190, 0
      %v482 = vsel %vm246, %v191, 0
      %v485 = vsel %vm246, %v192, 0
      %v488 = vsel %vm246, %v193, 0
      %v491 = vsel %vm246, %v194, 0
      %v494 = vsel %vm246, %v195, 0
      %v497 = vsel %vm246, %v196, 0
      %v500 = vsel %vm246, %v197, 0
      %v503 = vsel %vm246, %v198, 0
      %v506 = vsel %vm246, %v199, 0
      %v509 = vsel %vm246, %v200, 0
      %v512 = vsel %vm246, %v201, 0
      %v515 = vsel %vm246, %v202, 0
      %v518 = vsel %vm246, %v203, 0
      %v521 = vsel %vm246, %v204, 0
      %v524 = vsel %vm246, %v205, 0
      %v527 = vsel %vm246, %v206, 0
      %529 = vmatpush.xpose.msra.mxu0 %v467
      %530 = vmatpush.xpose.msra.mxu0 %v464
      %531 = vmatpush.xpose.msra.mxu0 %v461
      %532 = vmatpush.xpose.msra.mxu0 %v458
      %533 = vmatpush.xpose.msra.mxu0 %v455
      %534 = vmatpush.xpose.msra.mxu0 %v452
      %535 = vmatpush.xpose.msra.mxu0 %v449
      %536 = vmatpush.xpose.msra.mxu0 %v446
      %537 = vmatpush.xpose.msra.mxu0 %v443
      %538 = vmatpush.xpose.msra.mxu0 %v440
      %539 = vmatpush.xpose.msra.mxu0 %v437
      %540 = vmatpush.xpose.msra.mxu0 %v434
      %541 = vmatpush.xpose.msra.mxu0 %v431
      %542 = vmatpush.xpose.msra.mxu0 %v428
      %543 = vmatpush.xpose.msra.mxu0 %v425
      %544 = vmatpush.xpose.msra.mxu0 %v422
      %545 = vmatmul.f32.gmra.mxu0 %v419
      %v546 = vpop.f32.mrf.mxu0
      %v547 = vadd.f32 %v376, %v546
      %548 = vdwg.mxu0
      %549 = vmatpush.xpose.msra.mxu0 %v515
      %550 = vmatpush.xpose.msra.mxu0 %v512
      %551 = vmatpush.xpose.msra.mxu0 %v509
      %552 = vmatpush.xpose.msra.mxu0 %v506
      %553 = vmatpush.xpose.msra.mxu0 %v503
      %554 = vmatpush.xpose.msra.mxu0 %v500
      %555 = vmatpush.xpose.msra.mxu0 %v497
      %556 = vmatpush.xpose.msra.mxu0 %v494
      %557 = vmatpush.xpose.msra.mxu0 %v491
      %558 = vmatpush.xpose.msra.mxu0 %v488
      %559 = vmatpush.xpose.msra.mxu0 %v485
      %560 = vmatpush.xpose.msra.mxu0 %v482
      %561 = vmatpush.xpose.msra.mxu0 %v479
      %562 = vmatpush.xpose.msra.mxu0 %v476
      %563 = vmatpush.xpose.msra.mxu0 %v473
      %564 = vmatpush.xpose.msra.mxu0 %v470
      %565 = vmatmul.f32.gmra.mxu0 %v419
      %v566 = vpop.f32.mrf.mxu0
      %v567 = vadd.f32 %v396, %v566
      %568 = vdwg.mxu0
      %569 = vmatpush.xpose.msra.mxu0 0.0
      %570 = vmatpush.xpose.msra.mxu0 0.0
      %571 = vmatpush.xpose.msra.mxu0 0.0
      %572 = vmatpush.xpose.msra.mxu0 0.0
      %573 = vmatpush.xpose.msra.mxu0 0.0
      %574 = vmatpush.xpose.msra.mxu0 0.0
      %575 = vmatpush.xpose.msra.mxu0 0.0
      %576 = vmatpush.xpose.msra.mxu0 0.0
      %577 = vmatpush.xpose.msra.mxu0 0.0
      %578 = vmatpush.xpose.msra.mxu0 0.0
      %579 = vmatpush.xpose.msra.mxu0 0.0
      %580 = vmatpush.xpose.msra.mxu0 0.0
      %581 = vmatpush.xpose.msra.mxu0 %v527
      %582 = vmatpush.xpose.msra.mxu0 %v524
      %583 = vmatpush.xpose.msra.mxu0 %v521
      %584 = vmatpush.xpose.msra.mxu0 %v518
      %585 = vmatmul.f32.gmra.mxu0 %v419
      %v586 = vpop.f32.mrf.mxu0
      %v587 = vadd.f32 %v416, %v586
      %588 = vdwg.mxu0
      %v589 = vld [vmem:[%s165 + $0x2] sm:$0xff]
      %v590 = vld [vmem:[%s165 + $0xa] sm:$0xff]
      %v591 = vld [vmem:[%s165 + $0x12] sm:$0xff]
      %v592 = vld [vmem:[%s165 + $0x1a] sm:$0xff]
      %v593 = vld [vmem:[%s165 + $0x22] sm:$0xff]
      %v594 = vld [vmem:[%s165 + $0x2a] sm:$0xff]
      %v595 = vld [vmem:[%s165 + $0x32] sm:$0xff]
      %v596 = vld [vmem:[%s165 + $0x3a] sm:$0xff]
      %v597 = vld [vmem:[%s165 + $0x42] sm:$0xff]
      %v598 = vld [vmem:[%s165 + $0x4a] sm:$0xff]
      %v599 = vld [vmem:[%s165 + $0x52] sm:$0xff]
      %v600 = vld [vmem:[%s165 + $0x5a] sm:$0xff]
      %v601 = vld [vmem:[%s165 + $0x62] sm:$0xff]
      %v602 = vld [vmem:[%s165 + $0x6a] sm:$0xff]
      %v603 = vld [vmem:[%s165 + $0x72] sm:$0xff]
      %v604 = vld [vmem:[%s165 + $0x7a] sm:$0xff]
      %v605 = vld [vmem:[%s165 + $0x82] sm:$0xff]
      %v606 = vld [vmem:[%s165 + $0x8a] sm:$0xff]
      %v607 = vld [vmem:[%s165 + $0x92] sm:$0xff]
      %v608 = vld [vmem:[%s165 + $0x9a] sm:$0xff]
      %v609 = vld [vmem:[%s165 + $0xa2] sm:$0xff]
      %v610 = vld [vmem:[%s165 + $0xaa] sm:$0xff]
      %v611 = vld [vmem:[%s165 + $0xb2] sm:$0xff]
      %v612 = vld [vmem:[%s165 + $0xba] sm:$0xff]
      %v613 = vld [vmem:[%s165 + $0xc2] sm:$0xff]
      %v614 = vld [vmem:[%s165 + $0xca] sm:$0xff]
      %v615 = vld [vmem:[%s165 + $0xd2] sm:$0xff]
      %v616 = vld [vmem:[%s165 + $0xda] sm:$0xff]
      %v617 = vld [vmem:[%s165 + $0xe2] sm:$0xff]
      %v618 = vld [vmem:[%s165 + $0xea] sm:$0xff]
      %v619 = vld [vmem:[%s165 + $0xf2] sm:$0xff]
      %v620 = vld [vmem:[%s165 + $0xfa] sm:$0xff]
      %v621 = vld [vmem:[%s165 + $0x102] sm:$0xff]
      %v622 = vld [vmem:[%s165 + $0x10a] sm:$0xff]
      %v623 = vld [vmem:[%s165 + $0x112] sm:$0xff]
      %v624 = vld [vmem:[%s165 + $0x11a] sm:$0xff]
      %s625 = scalar_lea.vmem %s1, 16
      %v626 = vld [vmem:[%s625] sm:$0xff]
      %v628 = vsel %vm246, %v626, 0
      %v631 = vsel %vm246, %v589, 0
      %v634 = vsel %vm246, %v590, 0
      %v637 = vsel %vm246, %v591, 0
      %v640 = vsel %vm246, %v592, 0
      %v643 = vsel %vm246, %v593, 0
      %v646 = vsel %vm246, %v594, 0
      %v649 = vsel %vm246, %v595, 0
      %v652 = vsel %vm246, %v596, 0
      %v655 = vsel %vm246, %v597, 0
      %v658 = vsel %vm246, %v598, 0
      %v661 = vsel %vm246, %v599, 0
      %v664 = vsel %vm246, %v600, 0
      %v667 = vsel %vm246, %v601, 0
      %v670 = vsel %vm246, %v602, 0
      %v673 = vsel %vm246, %v603, 0
      %v676 = vsel %vm246, %v604, 0
      %v679 = vsel %vm246, %v605, 0
      %v682 = vsel %vm246, %v606, 0
      %v685 = vsel %vm246, %v607, 0
      %v688 = vsel %vm246, %v608, 0
      %v691 = vsel %vm246, %v609, 0
      %v694 = vsel %vm246, %v610, 0
      %v697 = vsel %vm246, %v611, 0
      %v700 = vsel %vm246, %v612, 0
      %v703 = vsel %vm246, %v613, 0
      %v706 = vsel %vm246, %v614, 0
      %v709 = vsel %vm246, %v615, 0
      %v712 = vsel %vm246, %v616, 0
      %v715 = vsel %vm246, %v617, 0
      %v718 = vsel %vm246, %v618, 0
      %v721 = vsel %vm246, %v619, 0
      %v724 = vsel %vm246, %v620, 0
      %v727 = vsel %vm246, %v621, 0
      %v730 = vsel %vm246, %v622, 0
      %v733 = vsel %vm246, %v623, 0
      %v736 = vsel %vm246, %v624, 0
      %738 = vmatpush.xpose.msra.mxu0 %v676
      %739 = vmatpush.xpose.msra.mxu0 %v673
      %740 = vmatpush.xpose.msra.mxu0 %v670
      %741 = vmatpush.xpose.msra.mxu0 %v667
      %742 = vmatpush.xpose.msra.mxu0 %v664
      %743 = vmatpush.xpose.msra.mxu0 %v661
      %744 = vmatpush.xpose.msra.mxu0 %v658
      %745 = vmatpush.xpose.msra.mxu0 %v655
      %746 = vmatpush.xpose.msra.mxu0 %v652
      %747 = vmatpush.xpose.msra.mxu0 %v649
      %748 = vmatpush.xpose.msra.mxu0 %v646
      %749 = vmatpush.xpose.msra.mxu0 %v643
      %750 = vmatpush.xpose.msra.mxu0 %v640
      %751 = vmatpush.xpose.msra.mxu0 %v637
      %752 = vmatpush.xpose.msra.mxu0 %v634
      %753 = vmatpush.xpose.msra.mxu0 %v631
      %754 = vmatmul.f32.gmra.mxu0 %v628
      %v755 = vpop.f32.mrf.mxu0
      %v756 = vadd.f32 0.0, %v755
      %757 = vdwg.mxu0
      %758 = vmatpush.xpose.msra.mxu0 %v724
      %759 = vmatpush.xpose.msra.mxu0 %v721
      %760 = vmatpush.xpose.msra.mxu0 %v718
      %761 = vmatpush.xpose.msra.mxu0 %v715
      %762 = vmatpush.xpose.msra.mxu0 %v712
      %763 = vmatpush.xpose.msra.mxu0 %v709
      %764 = vmatpush.xpose.msra.mxu0 %v706
      %765 = vmatpush.xpose.msra.mxu0 %v703
      %766 = vmatpush.xpose.msra.mxu0 %v700
      %767 = vmatpush.xpose.msra.mxu0 %v697
      %768 = vmatpush.xpose.msra.mxu0 %v694
      %769 = vmatpush.xpose.msra.mxu0 %v691
      %770 = vmatpush.xpose.msra.mxu0 %v688
      %771 = vmatpush.xpose.msra.mxu0 %v685
      %772 = vmatpush.xpose.msra.mxu0 %v682
      %773 = vmatpush.xpose.msra.mxu0 %v679
      %774 = vmatmul.f32.gmra.mxu0 %v628
      %v775 = vpop.f32.mrf.mxu0
      %v776 = vadd.f32 0.0, %v775
      %777 = vdwg.mxu0
      %778 = vmatpush.xpose.msra.mxu0 0.0
      %779 = vmatpush.xpose.msra.mxu0 0.0
      %780 = vmatpush.xpose.msra.mxu0 0.0
      %781 = vmatpush.xpose.msra.mxu0 0.0
      %782 = vmatpush.xpose.msra.mxu0 0.0
      %783 = vmatpush.xpose.msra.mxu0 0.0
      %784 = vmatpush.xpose.msra.mxu0 0.0
      %785 = vmatpush.xpose.msra.mxu0 0.0
      %786 = vmatpush.xpose.msra.mxu0 0.0
      %787 = vmatpush.xpose.msra.mxu0 0.0
      %788 = vmatpush.xpose.msra.mxu0 0.0
      %789 = vmatpush.xpose.msra.mxu0 0.0
      %790 = vmatpush.xpose.msra.mxu0 %v736
      %791 = vmatpush.xpose.msra.mxu0 %v733
      %792 = vmatpush.xpose.msra.mxu0 %v730
      %793 = vmatpush.xpose.msra.mxu0 %v727
      %794 = vmatmul.f32.gmra.mxu0 %v628
      %v795 = vpop.f32.mrf.mxu0
      %v796 = vadd.f32 0.0, %v795
      %797 = vdwg.mxu0
      %v798 = vadd.f32 %v547, %v756
      %v799 = vadd.f32 %v567, %v776
      %v800 = vadd.f32 %v587, %v796
      %v801 = vld [vmem:[%s165 + $0x12] sm:$0xff]
      %v802 = vld [vmem:[%s165 + $0x1a] sm:$0xff]
      %v803 = vld [vmem:[%s165 + $0x22] sm:$0xff]
      %v804 = vld [vmem:[%s165 + $0x2a] sm:$0xff]
      %v805 = vld [vmem:[%s165 + $0x32] sm:$0xff]
      %v806 = vld [vmem:[%s165 + $0x3a] sm:$0xff]
      %v807 = vld [vmem:[%s165 + $0x42] sm:$0xff]
      %v808 = vld [vmem:[%s165 + $0x4a] sm:$0xff]
      %v809 = vld [vmem:[%s165 + $0x52] sm:$0xff]
      %v810 = vld [vmem:[%s165 + $0x5a] sm:$0xff]
      %v811 = vld [vmem:[%s165 + $0x62] sm:$0xff]
      %v812 = vld [vmem:[%s165 + $0x6a] sm:$0xff]
      %v813 = vld [vmem:[%s165 + $0x72] sm:$0xff]
      %v814 = vld [vmem:[%s165 + $0x7a] sm:$0xff]
      %v815 = vld [vmem:[%s165 + $0x82] sm:$0xff]
      %v816 = vld [vmem:[%s165 + $0x8a] sm:$0xff]
      %v817 = vld [vmem:[%s165 + $0x92] sm:$0xff]
      %v818 = vld [vmem:[%s165 + $0x9a] sm:$0xff]
      %v819 = vld [vmem:[%s165 + $0xa2] sm:$0xff]
      %v820 = vld [vmem:[%s165 + $0xaa] sm:$0xff]
      %v821 = vld [vmem:[%s165 + $0xb2] sm:$0xff]
      %v822 = vld [vmem:[%s165 + $0xba] sm:$0xff]
      %v823 = vld [vmem:[%s165 + $0xc2] sm:$0xff]
      %v824 = vld [vmem:[%s165 + $0xca] sm:$0xff]
      %v825 = vld [vmem:[%s165 + $0xd2] sm:$0xff]
      %v826 = vld [vmem:[%s165 + $0xda] sm:$0xff]
      %v827 = vld [vmem:[%s165 + $0xe2] sm:$0xff]
      %v828 = vld [vmem:[%s165 + $0xea] sm:$0xff]
      %v829 = vld [vmem:[%s165 + $0xf2] sm:$0xff]
      %v830 = vld [vmem:[%s165 + $0xfa] sm:$0xff]
      %v831 = vld [vmem:[%s165 + $0x102] sm:$0xff]
      %v832 = vld [vmem:[%s165 + $0x10a] sm:$0xff]
      %v833 = vld [vmem:[%s165 + $0x112] sm:$0xff]
      %v834 = vld [vmem:[%s165 + $0x11a] sm:$0xff]
      %v835 = vld [vmem:[%s165 + $0x122] sm:$0xff]
      %v836 = vld [vmem:[%s165 + $0x12a] sm:$0xff]
      %s837 = scalar_lea.vmem %s1, 24
      %v838 = vld [vmem:[%s837] sm:$0xff]
      %v840 = vsel %vm246, %v838, 0
      %v843 = vsel %vm246, %v801, 0
      %v846 = vsel %vm246, %v802, 0
      %v849 = vsel %vm246, %v803, 0
      %v852 = vsel %vm246, %v804, 0
      %v855 = vsel %vm246, %v805, 0
      %v858 = vsel %vm246, %v806, 0
      %v861 = vsel %vm246, %v807, 0
      %v864 = vsel %vm246, %v808, 0
      %v867 = vsel %vm246, %v809, 0
      %v870 = vsel %vm246, %v810, 0
      %v873 = vsel %vm246, %v811, 0
      %v876 = vsel %vm246, %v812, 0
      %v879 = vsel %vm246, %v813, 0
      %v882 = vsel %vm246, %v814, 0
      %v885 = vsel %vm246, %v815, 0
      %v888 = vsel %vm246, %v816, 0
      %v891 = vsel %vm246, %v817, 0
      %v894 = vsel %vm246, %v818, 0
      %v897 = vsel %vm246, %v819, 0
      %v900 = vsel %vm246, %v820, 0
      %v903 = vsel %vm246, %v821, 0
      %v906 = vsel %vm246, %v822, 0
      %v909 = vsel %vm246, %v823, 0
      %v912 = vsel %vm246, %v824, 0
      %v915 = vsel %vm246, %v825, 0
      %v918 = vsel %vm246, %v826, 0
      %v921 = vsel %vm246, %v827, 0
      %v924 = vsel %vm246, %v828, 0
      %v927 = vsel %vm246, %v829, 0
      %v930 = vsel %vm246, %v830, 0
      %v933 = vsel %vm246, %v831, 0
      %v936 = vsel %vm246, %v832, 0
      %v939 = vsel %vm246, %v833, 0
      %v942 = vsel %vm246, %v834, 0
      %v945 = vsel %vm246, %v835, 0
      %v948 = vsel %vm246, %v836, 0
      %950 = vmatpush.xpose.msra.mxu0 %v888
      %951 = vmatpush.xpose.msra.mxu0 %v885
      %952 = vmatpush.xpose.msra.mxu0 %v882
      %953 = vmatpush.xpose.msra.mxu0 %v879
      %954 = vmatpush.xpose.msra.mxu0 %v876
      %955 = vmatpush.xpose.msra.mxu0 %v873
      %956 = vmatpush.xpose.msra.mxu0 %v870
      %957 = vmatpush.xpose.msra.mxu0 %v867
      %958 = vmatpush.xpose.msra.mxu0 %v864
      %959 = vmatpush.xpose.msra.mxu0 %v861
      %960 = vmatpush.xpose.msra.mxu0 %v858
      %961 = vmatpush.xpose.msra.mxu0 %v855
      %962 = vmatpush.xpose.msra.mxu0 %v852
      %963 = vmatpush.xpose.msra.mxu0 %v849
      %964 = vmatpush.xpose.msra.mxu0 %v846
      %965 = vmatpush.xpose.msra.mxu0 %v843
      %966 = vmatmul.f32.gmra.mxu0 %v840
      %v967 = vpop.f32.mrf.mxu0
      %v968 = vadd.f32 0.0, %v967
      %969 = vdwg.mxu0
      %970 = vmatpush.xpose.msra.mxu0 %v936
      %971 = vmatpush.xpose.msra.mxu0 %v933
      %972 = vmatpush.xpose.msra.mxu0 %v930
      %973 = vmatpush.xpose.msra.mxu0 %v927
      %974 = vmatpush.xpose.msra.mxu0 %v924
      %975 = vmatpush.xpose.msra.mxu0 %v921
      %976 = vmatpush.xpose.msra.mxu0 %v918
      %977 = vmatpush.xpose.msra.mxu0 %v915
      %978 = vmatpush.xpose.msra.mxu0 %v912
      %979 = vmatpush.xpose.msra.mxu0 %v909
      %980 = vmatpush.xpose.msra.mxu0 %v906
      %981 = vmatpush.xpose.msra.mxu0 %v903
      %982 = vmatpush.xpose.msra.mxu0 %v900
      %983 = vmatpush.xpose.msra.mxu0 %v897
      %984 = vmatpush.xpose.msra.mxu0 %v894
      %985 = vmatpush.xpose.msra.mxu0 %v891
      %986 = vmatmul.f32.gmra.mxu0 %v840
      %v987 = vpop.f32.mrf.mxu0
      %v988 = vadd.f32 0.0, %v987
      %989 = vdwg.mxu0
      %990 = vmatpush.xpose.msra.mxu0 0.0
      %991 = vmatpush.xpose.msra.mxu0 0.0
      %992 = vmatpush.xpose.msra.mxu0 0.0
      %993 = vmatpush.xpose.msra.mxu0 0.0
      %994 = vmatpush.xpose.msra.mxu0 0.0
      %995 = vmatpush.xpose.msra.mxu0 0.0
      %996 = vmatpush.xpose.msra.mxu0 0.0
      %997 = vmatpush.xpose.msra.mxu0 0.0
      %998 = vmatpush.xpose.msra.mxu0 0.0
      %999 = vmatpush.xpose.msra.mxu0 0.0
      %1000 = vmatpush.xpose.msra.mxu0 0.0
      %1001 = vmatpush.xpose.msra.mxu0 0.0
      %1002 = vmatpush.xpose.msra.mxu0 %v948
      %1003 = vmatpush.xpose.msra.mxu0 %v945
      %1004 = vmatpush.xpose.msra.mxu0 %v942
      %1005 = vmatpush.xpose.msra.mxu0 %v939
      %1006 = vmatmul.f32.gmra.mxu0 %v840
      %v1007 = vpop.f32.mrf.mxu0
      %v1008 = vadd.f32 0.0, %v1007
      %1009 = vdwg.mxu0
      %v1010 = vadd.f32 %v798, %v968
      %v1011 = vadd.f32 %v799, %v988
      %v1012 = vadd.f32 %v800, %v1008
      %v1013 = vld [vmem:[%s165 + $0x13] sm:$0xff]
      %v1014 = vld [vmem:[%s165 + $0x1b] sm:$0xff]
      %v1015 = vld [vmem:[%s165 + $0x23] sm:$0xff]
      %v1016 = vld [vmem:[%s165 + $0x2b] sm:$0xff]
      %v1017 = vld [vmem:[%s165 + $0x33] sm:$0xff]
      %v1018 = vld [vmem:[%s165 + $0x3b] sm:$0xff]
      %v1019 = vld [vmem:[%s165 + $0x43] sm:$0xff]
      %v1020 = vld [vmem:[%s165 + $0x4b] sm:$0xff]
      %v1021 = vld [vmem:[%s165 + $0x53] sm:$0xff]
      %v1022 = vld [vmem:[%s165 + $0x5b] sm:$0xff]
      %v1023 = vld [vmem:[%s165 + $0x63] sm:$0xff]
      %v1024 = vld [vmem:[%s165 + $0x6b] sm:$0xff]
      %v1025 = vld [vmem:[%s165 + $0x73] sm:$0xff]
      %v1026 = vld [vmem:[%s165 + $0x7b] sm:$0xff]
      %v1027 = vld [vmem:[%s165 + $0x83] sm:$0xff]
      %v1028 = vld [vmem:[%s165 + $0x8b] sm:$0xff]
      %v1029 = vld [vmem:[%s165 + $0x93] sm:$0xff]
      %v1030 = vld [vmem:[%s165 + $0x9b] sm:$0xff]
      %v1031 = vld [vmem:[%s165 + $0xa3] sm:$0xff]
      %v1032 = vld [vmem:[%s165 + $0xab] sm:$0xff]
      %v1033 = vld [vmem:[%s165 + $0xb3] sm:$0xff]
      %v1034 = vld [vmem:[%s165 + $0xbb] sm:$0xff]
      %v1035 = vld [vmem:[%s165 + $0xc3] sm:$0xff]
      %v1036 = vld [vmem:[%s165 + $0xcb] sm:$0xff]
      %v1037 = vld [vmem:[%s165 + $0xd3] sm:$0xff]
      %v1038 = vld [vmem:[%s165 + $0xdb] sm:$0xff]
      %v1039 = vld [vmem:[%s165 + $0xe3] sm:$0xff]
      %v1040 = vld [vmem:[%s165 + $0xeb] sm:$0xff]
      %v1041 = vld [vmem:[%s165 + $0xf3] sm:$0xff]
      %v1042 = vld [vmem:[%s165 + $0xfb] sm:$0xff]
      %v1043 = vld [vmem:[%s165 + $0x103] sm:$0xff]
      %v1044 = vld [vmem:[%s165 + $0x10b] sm:$0xff]
      %v1045 = vld [vmem:[%s165 + $0x113] sm:$0xff]
      %v1046 = vld [vmem:[%s165 + $0x11b] sm:$0xff]
      %v1047 = vld [vmem:[%s165 + $0x123] sm:$0xff]
      %v1048 = vld [vmem:[%s165 + $0x12b] sm:$0xff]
      %s1049 = scalar_lea.vmem %s1, 32
      %v1050 = vld [vmem:[%s1049] sm:$0xff]
      %v1052 = vsel %vm246, %v1050, 0
      %v1055 = vsel %vm246, %v1013, 0
      %v1058 = vsel %vm246, %v1014, 0
      %v1061 = vsel %vm246, %v1015, 0
      %v1064 = vsel %vm246, %v1016, 0
      %v1067 = vsel %vm246, %v1017, 0
      %v1070 = vsel %vm246, %v1018, 0
      %v1073 = vsel %vm246, %v1019, 0
      %v1076 = vsel %vm246, %v1020, 0
      %v1079 = vsel %vm246, %v1021, 0
      %v1082 = vsel %vm246, %v1022, 0
      %v1085 = vsel %vm246, %v1023, 0
      %v1088 = vsel %vm246, %v1024, 0
      %v1091 = vsel %vm246, %v1025, 0
      %v1094 = vsel %vm246, %v1026, 0
      %v1097 = vsel %vm246, %v1027, 0
      %v1100 = vsel %vm246, %v1028, 0
      %v1103 = vsel %vm246, %v1029, 0
      %v1106 = vsel %vm246, %v1030, 0
      %v1109 = vsel %vm246, %v1031, 0
      %v1112 = vsel %vm246, %v1032, 0
      %v1115 = vsel %vm246, %v1033, 0
      %v1118 = vsel %vm246, %v1034, 0
      %v1121 = vsel %vm246, %v1035, 0
      %v1124 = vsel %vm246, %v1036, 0
      %v1127 = vsel %vm246, %v1037, 0
      %v1130 = vsel %vm246, %v1038, 0
      %v1133 = vsel %vm246, %v1039, 0
      %v1136 = vsel %vm246, %v1040, 0
      %v1139 = vsel %vm246, %v1041, 0
      %v1142 = vsel %vm246, %v1042, 0
      %v1145 = vsel %vm246, %v1043, 0
      %v1148 = vsel %vm246, %v1044, 0
      %v1151 = vsel %vm246, %v1045, 0
      %v1154 = vsel %vm246, %v1046, 0
      %v1157 = vsel %vm246, %v1047, 0
      %v1160 = vsel %vm246, %v1048, 0
      %1162 = vmatpush.xpose.msra.mxu0 %v1100
      %1163 = vmatpush.xpose.msra.mxu0 %v1097
      %1164 = vmatpush.xpose.msra.mxu0 %v1094
      %1165 = vmatpush.xpose.msra.mxu0 %v1091
      %1166 = vmatpush.xpose.msra.mxu0 %v1088
      %1167 = vmatpush.xpose.msra.mxu0 %v1085
      %1168 = vmatpush.xpose.msra.mxu0 %v1082
      %1169 = vmatpush.xpose.msra.mxu0 %v1079
      %1170 = vmatpush.xpose.msra.mxu0 %v1076
      %1171 = vmatpush.xpose.msra.mxu0 %v1073
      %1172 = vmatpush.xpose.msra.mxu0 %v1070
      %1173 = vmatpush.xpose.msra.mxu0 %v1067
      %1174 = vmatpush.xpose.msra.mxu0 %v1064
      %1175 = vmatpush.xpose.msra.mxu0 %v1061
      %1176 = vmatpush.xpose.msra.mxu0 %v1058
      %1177 = vmatpush.xpose.msra.mxu0 %v1055
      %1178 = vmatmul.f32.gmra.mxu0 %v1052
      %v1179 = vpop.f32.mrf.mxu0
      %v1180 = vadd.f32 0.0, %v1179
      %1181 = vdwg.mxu0
      %1182 = vmatpush.xpose.msra.mxu0 %v1148
      %1183 = vmatpush.xpose.msra.mxu0 %v1145
      %1184 = vmatpush.xpose.msra.mxu0 %v1142
      %1185 = vmatpush.xpose.msra.mxu0 %v1139
      %1186 = vmatpush.xpose.msra.mxu0 %v1136
      %1187 = vmatpush.xpose.msra.mxu0 %v1133
      %1188 = vmatpush.xpose.msra.mxu0 %v1130
      %1189 = vmatpush.xpose.msra.mxu0 %v1127
      %1190 = vmatpush.xpose.msra.mxu0 %v1124
      %1191 = vmatpush.xpose.msra.mxu0 %v1121
      %1192 = vmatpush.xpose.msra.mxu0 %v1118
      %1193 = vmatpush.xpose.msra.mxu0 %v1115
      %1194 = vmatpush.xpose.msra.mxu0 %v1112
      %1195 = vmatpush.xpose.msra.mxu0 %v1109
      %1196 = vmatpush.xpose.msra.mxu0 %v1106
      %1197 = vmatpush.xpose.msra.mxu0 %v1103
      %1198 = vmatmul.f32.gmra.mxu0 %v1052
      %v1199 = vpop.f32.mrf.mxu0
      %v1200 = vadd.f32 0.0, %v1199
      %1201 = vdwg.mxu0
      %1202 = vmatpush.xpose.msra.mxu0 0.0
      %1203 = vmatpush.xpose.msra.mxu0 0.0
      %1204 = vmatpush.xpose.msra.mxu0 0.0
      %1205 = vmatpush.xpose.msra.mxu0 0.0
      %1206 = vmatpush.xpose.msra.mxu0 0.0
      %1207 = vmatpush.xpose.msra.mxu0 0.0
      %1208 = vmatpush.xpose.msra.mxu0 0.0
      %1209 = vmatpush.xpose.msra.mxu0 0.0
      %1210 = vmatpush.xpose.msra.mxu0 0.0
      %1211 = vmatpush.xpose.msra.mxu0 0.0
      %1212 = vmatpush.xpose.msra.mxu0 0.0
      %1213 = vmatpush.xpose.msra.mxu0 0.0
      %1214 = vmatpush.xpose.msra.mxu0 %v1160
      %1215 = vmatpush.xpose.msra.mxu0 %v1157
      %1216 = vmatpush.xpose.msra.mxu0 %v1154
      %1217 = vmatpush.xpose.msra.mxu0 %v1151
      %1218 = vmatmul.f32.gmra.mxu0 %v1052
      %v1219 = vpop.f32.mrf.mxu0
      %v1220 = vadd.f32 0.0, %v1219
      %1221 = vdwg.mxu0
      %v1222 = vadd.f32 %v1010, %v1180
      %v1223 = vadd.f32 %v1011, %v1200
      %v1224 = vadd.f32 %v1012, %v1220
      %v1225 = vld [vmem:[%s165 + $0x14] sm:$0xff]
      %v1226 = vld [vmem:[%s165 + $0x1c] sm:$0xff]
      %v1227 = vld [vmem:[%s165 + $0x24] sm:$0xff]
      %v1228 = vld [vmem:[%s165 + $0x2c] sm:$0xff]
      %v1229 = vld [vmem:[%s165 + $0x34] sm:$0xff]
      %v1230 = vld [vmem:[%s165 + $0x3c] sm:$0xff]
      %v1231 = vld [vmem:[%s165 + $0x44] sm:$0xff]
      %v1232 = vld [vmem:[%s165 + $0x4c] sm:$0xff]
      %v1233 = vld [vmem:[%s165 + $0x54] sm:$0xff]
      %v1234 = vld [vmem:[%s165 + $0x5c] sm:$0xff]
      %v1235 = vld [vmem:[%s165 + $0x64] sm:$0xff]
      %v1236 = vld [vmem:[%s165 + $0x6c] sm:$0xff]
      %v1237 = vld [vmem:[%s165 + $0x74] sm:$0xff]
      %v1238 = vld [vmem:[%s165 + $0x7c] sm:$0xff]
      %v1239 = vld [vmem:[%s165 + $0x84] sm:$0xff]
      %v1240 = vld [vmem:[%s165 + $0x8c] sm:$0xff]
      %v1241 = vld [vmem:[%s165 + $0x94] sm:$0xff]
      %v1242 = vld [vmem:[%s165 + $0x9c] sm:$0xff]
      %v1243 = vld [vmem:[%s165 + $0xa4] sm:$0xff]
      %v1244 = vld [vmem:[%s165 + $0xac] sm:$0xff]
      %v1245 = vld [vmem:[%s165 + $0xb4] sm:$0xff]
      %v1246 = vld [vmem:[%s165 + $0xbc] sm:$0xff]
      %v1247 = vld [vmem:[%s165 + $0xc4] sm:$0xff]
      %v1248 = vld [vmem:[%s165 + $0xcc] sm:$0xff]
      %v1249 = vld [vmem:[%s165 + $0xd4] sm:$0xff]
      %v1250 = vld [vmem:[%s165 + $0xdc] sm:$0xff]
      %v1251 = vld [vmem:[%s165 + $0xe4] sm:$0xff]
      %v1252 = vld [vmem:[%s165 + $0xec] sm:$0xff]
      %v1253 = vld [vmem:[%s165 + $0xf4] sm:$0xff]
      %v1254 = vld [vmem:[%s165 + $0xfc] sm:$0xff]
      %v1255 = vld [vmem:[%s165 + $0x104] sm:$0xff]
      %v1256 = vld [vmem:[%s165 + $0x10c] sm:$0xff]
      %v1257 = vld [vmem:[%s165 + $0x114] sm:$0xff]
      %v1258 = vld [vmem:[%s165 + $0x11c] sm:$0xff]
      %v1259 = vld [vmem:[%s165 + $0x124] sm:$0xff]
      %v1260 = vld [vmem:[%s165 + $0x12c] sm:$0xff]
      %s1261 = scalar_lea.vmem %s1, 40
      %v1262 = vld [vmem:[%s1261] sm:$0xff]
      %v1264 = vsel %vm246, %v1262, 0
      %v1267 = vsel %vm246, %v1225, 0
      %v1270 = vsel %vm246, %v1226, 0
      %v1273 = vsel %vm246, %v1227, 0
      %v1276 = vsel %vm246, %v1228, 0
      %v1279 = vsel %vm246, %v1229, 0
      %v1282 = vsel %vm246, %v1230, 0
      %v1285 = vsel %vm246, %v1231, 0
      %v1288 = vsel %vm246, %v1232, 0
      %v1291 = vsel %vm246, %v1233, 0
      %v1294 = vsel %vm246, %v1234, 0
      %v1297 = vsel %vm246, %v1235, 0
      %v1300 = vsel %vm246, %v1236, 0
      %v1303 = vsel %vm246, %v1237, 0
      %v1306 = vsel %vm246, %v1238, 0
      %v1309 = vsel %vm246, %v1239, 0
      %v1312 = vsel %vm246, %v1240, 0
      %v1315 = vsel %vm246, %v1241, 0
      %v1318 = vsel %vm246, %v1242, 0
      %v1321 = vsel %vm246, %v1243, 0
      %v1324 = vsel %vm246, %v1244, 0
      %v1327 = vsel %vm246, %v1245, 0
      %v1330 = vsel %vm246, %v1246, 0
      %v1333 = vsel %vm246, %v1247, 0
      %v1336 = vsel %vm246, %v1248, 0
      %v1339 = vsel %vm246, %v1249, 0
      %v1342 = vsel %vm246, %v1250, 0
      %v1345 = vsel %vm246, %v1251, 0
      %v1348 = vsel %vm246, %v1252, 0
      %v1351 = vsel %vm246, %v1253, 0
      %v1354 = vsel %vm246, %v1254, 0
      %v1357 = vsel %vm246, %v1255, 0
      %v1360 = vsel %vm246, %v1256, 0
      %v1363 = vsel %vm246, %v1257, 0
      %v1366 = vsel %vm246, %v1258, 0
      %v1369 = vsel %vm246, %v1259, 0
      %v1372 = vsel %vm246, %v1260, 0
      %1374 = vmatpush.xpose.msra.mxu0 %v1312
      %1375 = vmatpush.xpose.msra.mxu0 %v1309
      %1376 = vmatpush.xpose.msra.mxu0 %v1306
      %1377 = vmatpush.xpose.msra.mxu0 %v1303
      %1378 = vmatpush.xpose.msra.mxu0 %v1300
      %1379 = vmatpush.xpose.msra.mxu0 %v1297
      %1380 = vmatpush.xpose.msra.mxu0 %v1294
      %1381 = vmatpush.xpose.msra.mxu0 %v1291
      %1382 = vmatpush.xpose.msra.mxu0 %v1288
      %1383 = vmatpush.xpose.msra.mxu0 %v1285
      %1384 = vmatpush.xpose.msra.mxu0 %v1282
      %1385 = vmatpush.xpose.msra.mxu0 %v1279
      %1386 = vmatpush.xpose.msra.mxu0 %v1276
      %1387 = vmatpush.xpose.msra.mxu0 %v1273
      %1388 = vmatpush.xpose.msra.mxu0 %v1270
      %1389 = vmatpush.xpose.msra.mxu0 %v1267
      %1390 = vmatmul.f32.gmra.mxu0 %v1264
      %v1391 = vpop.f32.mrf.mxu0
      %v1392 = vadd.f32 0.0, %v1391
      %1393 = vdwg.mxu0
      %1394 = vmatpush.xpose.msra.mxu0 %v1360
      %1395 = vmatpush.xpose.msra.mxu0 %v1357
      %1396 = vmatpush.xpose.msra.mxu0 %v1354
      %1397 = vmatpush.xpose.msra.mxu0 %v1351
      %1398 = vmatpush.xpose.msra.mxu0 %v1348
      %1399 = vmatpush.xpose.msra.mxu0 %v1345
      %1400 = vmatpush.xpose.msra.mxu0 %v1342
      %1401 = vmatpush.xpose.msra.mxu0 %v1339
      %1402 = vmatpush.xpose.msra.mxu0 %v1336
      %1403 = vmatpush.xpose.msra.mxu0 %v1333
      %1404 = vmatpush.xpose.msra.mxu0 %v1330
      %1405 = vmatpush.xpose.msra.mxu0 %v1327
      %1406 = vmatpush.xpose.msra.mxu0 %v1324
      %1407 = vmatpush.xpose.msra.mxu0 %v1321
      %1408 = vmatpush.xpose.msra.mxu0 %v1318
      %1409 = vmatpush.xpose.msra.mxu0 %v1315
      %1410 = vmatmul.f32.gmra.mxu0 %v1264
      %v1411 = vpop.f32.mrf.mxu0
      %v1412 = vadd.f32 0.0, %v1411
      %1413 = vdwg.mxu0
      %1414 = vmatpush.xpose.msra.mxu0 0.0
      %1415 = vmatpush.xpose.msra.mxu0 0.0
      %1416 = vmatpush.xpose.msra.mxu0 0.0
      %1417 = vmatpush.xpose.msra.mxu0 0.0
      %1418 = vmatpush.xpose.msra.mxu0 0.0
      %1419 = vmatpush.xpose.msra.mxu0 0.0
      %1420 = vmatpush.xpose.msra.mxu0 0.0
      %1421 = vmatpush.xpose.msra.mxu0 0.0
      %1422 = vmatpush.xpose.msra.mxu0 0.0
      %1423 = vmatpush.xpose.msra.mxu0 0.0
      %1424 = vmatpush.xpose.msra.mxu0 0.0
      %1425 = vmatpush.xpose.msra.mxu0 0.0
      %1426 = vmatpush.xpose.msra.mxu0 %v1372
      %1427 = vmatpush.xpose.msra.mxu0 %v1369
      %1428 = vmatpush.xpose.msra.mxu0 %v1366
      %1429 = vmatpush.xpose.msra.mxu0 %v1363
      %1430 = vmatmul.f32.gmra.mxu0 %v1264
      %v1431 = vpop.f32.mrf.mxu0
      %v1432 = vadd.f32 0.0, %v1431
      %1433 = vdwg.mxu0
      %v1434 = vadd.f32 %v1222, %v1392
      %v1435 = vadd.f32 %v1223, %v1412
      %v1436 = vadd.f32 %v1224, %v1432
      %v1437 = vld [vmem:[%s165 + $0x24] sm:$0xff]
      %v1438 = vld [vmem:[%s165 + $0x2c] sm:$0xff]
      %v1439 = vld [vmem:[%s165 + $0x34] sm:$0xff]
      %v1440 = vld [vmem:[%s165 + $0x3c] sm:$0xff]
      %v1441 = vld [vmem:[%s165 + $0x44] sm:$0xff]
      %v1442 = vld [vmem:[%s165 + $0x4c] sm:$0xff]
      %v1443 = vld [vmem:[%s165 + $0x54] sm:$0xff]
      %v1444 = vld [vmem:[%s165 + $0x5c] sm:$0xff]
      %v1445 = vld [vmem:[%s165 + $0x64] sm:$0xff]
      %v1446 = vld [vmem:[%s165 + $0x6c] sm:$0xff]
      %v1447 = vld [vmem:[%s165 + $0x74] sm:$0xff]
      %v1448 = vld [vmem:[%s165 + $0x7c] sm:$0xff]
      %v1449 = vld [vmem:[%s165 + $0x84] sm:$0xff]
      %v1450 = vld [vmem:[%s165 + $0x8c] sm:$0xff]
      %v1451 = vld [vmem:[%s165 + $0x94] sm:$0xff]
      %v1452 = vld [vmem:[%s165 + $0x9c] sm:$0xff]
      %v1453 = vld [vmem:[%s165 + $0xa4] sm:$0xff]
      %v1454 = vld [vmem:[%s165 + $0xac] sm:$0xff]
      %v1455 = vld [vmem:[%s165 + $0xb4] sm:$0xff]
      %v1456 = vld [vmem:[%s165 + $0xbc] sm:$0xff]
      %v1457 = vld [vmem:[%s165 + $0xc4] sm:$0xff]
      %v1458 = vld [vmem:[%s165 + $0xcc] sm:$0xff]
      %v1459 = vld [vmem:[%s165 + $0xd4] sm:$0xff]
      %v1460 = vld [vmem:[%s165 + $0xdc] sm:$0xff]
      %v1461 = vld [vmem:[%s165 + $0xe4] sm:$0xff]
      %v1462 = vld [vmem:[%s165 + $0xec] sm:$0xff]
      %v1463 = vld [vmem:[%s165 + $0xf4] sm:$0xff]
      %v1464 = vld [vmem:[%s165 + $0xfc] sm:$0xff]
      %v1465 = vld [vmem:[%s165 + $0x104] sm:$0xff]
      %v1466 = vld [vmem:[%s165 + $0x10c] sm:$0xff]
      %v1467 = vld [vmem:[%s165 + $0x114] sm:$0xff]
      %v1468 = vld [vmem:[%s165 + $0x11c] sm:$0xff]
      %v1469 = vld [vmem:[%s165 + $0x124] sm:$0xff]
      %v1470 = vld [vmem:[%s165 + $0x12c] sm:$0xff]
      %v1471 = vld [vmem:[%s165 + $0x134] sm:$0xff]
      %v1472 = vld [vmem:[%s165 + $0x13c] sm:$0xff]
      %s1473 = scalar_lea.vmem %s1, 48
      %v1474 = vld [vmem:[%s1473] sm:$0xff]
      %v1476 = vsel %vm246, %v1474, 0
      %v1479 = vsel %vm246, %v1437, 0
      %v1482 = vsel %vm246, %v1438, 0
      %v1485 = vsel %vm246, %v1439, 0
      %v1488 = vsel %vm246, %v1440, 0
      %v1491 = vsel %vm246, %v1441, 0
      %v1494 = vsel %vm246, %v1442, 0
      %v1497 = vsel %vm246, %v1443, 0
      %v1500 = vsel %vm246, %v1444, 0
      %v1503 = vsel %vm246, %v1445, 0
      %v1506 = vsel %vm246, %v1446, 0
      %v1509 = vsel %vm246, %v1447, 0
      %v1512 = vsel %vm246, %v1448, 0
      %v1515 = vsel %vm246, %v1449, 0
      %v1518 = vsel %vm246, %v1450, 0
      %v1521 = vsel %vm246, %v1451, 0
      %v1524 = vsel %vm246, %v1452, 0
      %v1527 = vsel %vm246, %v1453, 0
      %v1530 = vsel %vm246, %v1454, 0
      %v1533 = vsel %vm246, %v1455, 0
      %v1536 = vsel %vm246, %v1456, 0
      %v1539 = vsel %vm246, %v1457, 0
      %v1542 = vsel %vm246, %v1458, 0
      %v1545 = vsel %vm246, %v1459, 0
      %v1548 = vsel %vm246, %v1460, 0
      %v1551 = vsel %vm246, %v1461, 0
      %v1554 = vsel %vm246, %v1462, 0
      %v1557 = vsel %vm246, %v1463, 0
      %v1560 = vsel %vm246, %v1464, 0
      %v1563 = vsel %vm246, %v1465, 0
      %v1566 = vsel %vm246, %v1466, 0
      %v1569 = vsel %vm246, %v1467, 0
      %v1572 = vsel %vm246, %v1468, 0
      %v1575 = vsel %vm246, %v1469, 0
      %v1578 = vsel %vm246, %v1470, 0
      %v1581 = vsel %vm246, %v1471, 0
      %v1584 = vsel %vm246, %v1472, 0
      %1586 = vmatpush.xpose.msra.mxu0 %v1524
      %1587 = vmatpush.xpose.msra.mxu0 %v1521
      %1588 = vmatpush.xpose.msra.mxu0 %v1518
      %1589 = vmatpush.xpose.msra.mxu0 %v1515
      %1590 = vmatpush.xpose.msra.mxu0 %v1512
      %1591 = vmatpush.xpose.msra.mxu0 %v1509
      %1592 = vmatpush.xpose.msra.mxu0 %v1506
      %1593 = vmatpush.xpose.msra.mxu0 %v1503
      %1594 = vmatpush.xpose.msra.mxu0 %v1500
      %1595 = vmatpush.xpose.msra.mxu0 %v1497
      %1596 = vmatpush.xpose.msra.mxu0 %v1494
      %1597 = vmatpush.xpose.msra.mxu0 %v1491
      %1598 = vmatpush.xpose.msra.mxu0 %v1488
      %1599 = vmatpush.xpose.msra.mxu0 %v1485
      %1600 = vmatpush.xpose.msra.mxu0 %v1482
      %1601 = vmatpush.xpose.msra.mxu0 %v1479
      %1602 = vmatmul.f32.gmra.mxu0 %v1476
      %v1603 = vpop.f32.mrf.mxu0
      %v1604 = vadd.f32 0.0, %v1603
      %1605 = vdwg.mxu0
      %1606 = vmatpush.xpose.msra.mxu0 %v1572
      %1607 = vmatpush.xpose.msra.mxu0 %v1569
      %1608 = vmatpush.xpose.msra.mxu0 %v1566
      %1609 = vmatpush.xpose.msra.mxu0 %v1563
      %1610 = vmatpush.xpose.msra.mxu0 %v1560
      %1611 = vmatpush.xpose.msra.mxu0 %v1557
      %1612 = vmatpush.xpose.msra.mxu0 %v1554
      %1613 = vmatpush.xpose.msra.mxu0 %v1551
      %1614 = vmatpush.xpose.msra.mxu0 %v1548
      %1615 = vmatpush.xpose.msra.mxu0 %v1545
      %1616 = vmatpush.xpose.msra.mxu0 %v1542
      %1617 = vmatpush.xpose.msra.mxu0 %v1539
      %1618 = vmatpush.xpose.msra.mxu0 %v1536
      %1619 = vmatpush.xpose.msra.mxu0 %v1533
      %1620 = vmatpush.xpose.msra.mxu0 %v1530
      %1621 = vmatpush.xpose.msra.mxu0 %v1527
      %1622 = vmatmul.f32.gmra.mxu0 %v1476
      %v1623 = vpop.f32.mrf.mxu0
      %v1624 = vadd.f32 0.0, %v1623
      %1625 = vdwg.mxu0
      %1626 = vmatpush.xpose.msra.mxu0 0.0
      %1627 = vmatpush.xpose.msra.mxu0 0.0
      %1628 = vmatpush.xpose.msra.mxu0 0.0
      %1629 = vmatpush.xpose.msra.mxu0 0.0
      %1630 = vmatpush.xpose.msra.mxu0 0.0
      %1631 = vmatpush.xpose.msra.mxu0 0.0
      %1632 = vmatpush.xpose.msra.mxu0 0.0
      %1633 = vmatpush.xpose.msra.mxu0 0.0
      %1634 = vmatpush.xpose.msra.mxu0 0.0
      %1635 = vmatpush.xpose.msra.mxu0 0.0
      %1636 = vmatpush.xpose.msra.mxu0 0.0
      %1637 = vmatpush.xpose.msra.mxu0 0.0
      %1638 = vmatpush.xpose.msra.mxu0 %v1584
      %1639 = vmatpush.xpose.msra.mxu0 %v1581
      %1640 = vmatpush.xpose.msra.mxu0 %v1578
      %1641 = vmatpush.xpose.msra.mxu0 %v1575
      %1642 = vmatmul.f32.gmra.mxu0 %v1476
      %v1643 = vpop.f32.mrf.mxu0
      %v1644 = vadd.f32 0.0, %v1643
      %1645 = vdwg.mxu0
      %v1646 = vadd.f32 %v1434, %v1604
      %v1647 = vadd.f32 %v1435, %v1624
      %v1648 = vadd.f32 %v1436, %v1644
      %v1649 = vld [vmem:[%s165 + $0x25] sm:$0xff]
      %v1650 = vld [vmem:[%s165 + $0x2d] sm:$0xff]
      %v1651 = vld [vmem:[%s165 + $0x35] sm:$0xff]
      %v1652 = vld [vmem:[%s165 + $0x3d] sm:$0xff]
      %v1653 = vld [vmem:[%s165 + $0x45] sm:$0xff]
      %v1654 = vld [vmem:[%s165 + $0x4d] sm:$0xff]
      %v1655 = vld [vmem:[%s165 + $0x55] sm:$0xff]
      %v1656 = vld [vmem:[%s165 + $0x5d] sm:$0xff]
      %v1657 = vld [vmem:[%s165 + $0x65] sm:$0xff]
      %v1658 = vld [vmem:[%s165 + $0x6d] sm:$0xff]
      %v1659 = vld [vmem:[%s165 + $0x75] sm:$0xff]
      %v1660 = vld [vmem:[%s165 + $0x7d] sm:$0xff]
      %v1661 = vld [vmem:[%s165 + $0x85] sm:$0xff]
      %v1662 = vld [vmem:[%s165 + $0x8d] sm:$0xff]
      %v1663 = vld [vmem:[%s165 + $0x95] sm:$0xff]
      %v1664 = vld [vmem:[%s165 + $0x9d] sm:$0xff]
      %v1665 = vld [vmem:[%s165 + $0xa5] sm:$0xff]
      %v1666 = vld [vmem:[%s165 + $0xad] sm:$0xff]
      %v1667 = vld [vmem:[%s165 + $0xb5] sm:$0xff]
      %v1668 = vld [vmem:[%s165 + $0xbd] sm:$0xff]
      %v1669 = vld [vmem:[%s165 + $0xc5] sm:$0xff]
      %v1670 = vld [vmem:[%s165 + $0xcd] sm:$0xff]
      %v1671 = vld [vmem:[%s165 + $0xd5] sm:$0xff]
      %v1672 = vld [vmem:[%s165 + $0xdd] sm:$0xff]
      %v1673 = vld [vmem:[%s165 + $0xe5] sm:$0xff]
      %v1674 = vld [vmem:[%s165 + $0xed] sm:$0xff]
      %v1675 = vld [vmem:[%s165 + $0xf5] sm:$0xff]
      %v1676 = vld [vmem:[%s165 + $0xfd] sm:$0xff]
      %v1677 = vld [vmem:[%s165 + $0x105] sm:$0xff]
      %v1678 = vld [vmem:[%s165 + $0x10d] sm:$0xff]
      %v1679 = vld [vmem:[%s165 + $0x115] sm:$0xff]
      %v1680 = vld [vmem:[%s165 + $0x11d] sm:$0xff]
      %v1681 = vld [vmem:[%s165 + $0x125] sm:$0xff]
      %v1682 = vld [vmem:[%s165 + $0x12d] sm:$0xff]
      %v1683 = vld [vmem:[%s165 + $0x135] sm:$0xff]
      %v1684 = vld [vmem:[%s165 + $0x13d] sm:$0xff]
      %s1685 = scalar_lea.vmem %s1, 56
      %v1686 = vld [vmem:[%s1685] sm:$0xff]
      %v1688 = vsel %vm246, %v1686, 0
      %v1691 = vsel %vm246, %v1649, 0
      %v1694 = vsel %vm246, %v1650, 0
      %v1697 = vsel %vm246, %v1651, 0
      %v1700 = vsel %vm246, %v1652, 0
      %v1703 = vsel %vm246, %v1653, 0
      %v1706 = vsel %vm246, %v1654, 0
      %v1709 = vsel %vm246, %v1655, 0
      %v1712 = vsel %vm246, %v1656, 0
      %v1715 = vsel %vm246, %v1657, 0
      %v1718 = vsel %vm246, %v1658, 0
      %v1721 = vsel %vm246, %v1659, 0
      %v1724 = vsel %vm246, %v1660, 0
      %v1727 = vsel %vm246, %v1661, 0
      %v1730 = vsel %vm246, %v1662, 0
      %v1733 = vsel %vm246, %v1663, 0
      %v1736 = vsel %vm246, %v1664, 0
      %v1739 = vsel %vm246, %v1665, 0
      %v1742 = vsel %vm246, %v1666, 0
      %v1745 = vsel %vm246, %v1667, 0
      %v1748 = vsel %vm246, %v1668, 0
      %v1751 = vsel %vm246, %v1669, 0
      %v1754 = vsel %vm246, %v1670, 0
      %v1757 = vsel %vm246, %v1671, 0
      %v1760 = vsel %vm246, %v1672, 0
      %v1763 = vsel %vm246, %v1673, 0
      %v1766 = vsel %vm246, %v1674, 0
      %v1769 = vsel %vm246, %v1675, 0
      %v1772 = vsel %vm246, %v1676, 0
      %v1775 = vsel %vm246, %v1677, 0
      %v1778 = vsel %vm246, %v1678, 0
      %v1781 = vsel %vm246, %v1679, 0
      %v1784 = vsel %vm246, %v1680, 0
      %v1787 = vsel %vm246, %v1681, 0
      %v1790 = vsel %vm246, %v1682, 0
      %v1793 = vsel %vm246, %v1683, 0
      %v1796 = vsel %vm246, %v1684, 0
      %1798 = vmatpush.xpose.msra.mxu0 %v1736
      %1799 = vmatpush.xpose.msra.mxu0 %v1733
      %1800 = vmatpush.xpose.msra.mxu0 %v1730
      %1801 = vmatpush.xpose.msra.mxu0 %v1727
      %1802 = vmatpush.xpose.msra.mxu0 %v1724
      %1803 = vmatpush.xpose.msra.mxu0 %v1721
      %1804 = vmatpush.xpose.msra.mxu0 %v1718
      %1805 = vmatpush.xpose.msra.mxu0 %v1715
      %1806 = vmatpush.xpose.msra.mxu0 %v1712
      %1807 = vmatpush.xpose.msra.mxu0 %v1709
      %1808 = vmatpush.xpose.msra.mxu0 %v1706
      %1809 = vmatpush.xpose.msra.mxu0 %v1703
      %1810 = vmatpush.xpose.msra.mxu0 %v1700
      %1811 = vmatpush.xpose.msra.mxu0 %v1697
      %1812 = vmatpush.xpose.msra.mxu0 %v1694
      %1813 = vmatpush.xpose.msra.mxu0 %v1691
      %1814 = vmatmul.f32.gmra.mxu0 %v1688
      %v1815 = vpop.f32.mrf.mxu0
      %v1816 = vadd.f32 0.0, %v1815
      %1817 = vdwg.mxu0
      %1818 = vmatpush.xpose.msra.mxu0 %v1784
      %1819 = vmatpush.xpose.msra.mxu0 %v1781
      %1820 = vmatpush.xpose.msra.mxu0 %v1778
      %1821 = vmatpush.xpose.msra.mxu0 %v1775
      %1822 = vmatpush.xpose.msra.mxu0 %v1772
      %1823 = vmatpush.xpose.msra.mxu0 %v1769
      %1824 = vmatpush.xpose.msra.mxu0 %v1766
      %1825 = vmatpush.xpose.msra.mxu0 %v1763
      %1826 = vmatpush.xpose.msra.mxu0 %v1760
      %1827 = vmatpush.xpose.msra.mxu0 %v1757
      %1828 = vmatpush.xpose.msra.mxu0 %v1754
      %1829 = vmatpush.xpose.msra.mxu0 %v1751
      %1830 = vmatpush.xpose.msra.mxu0 %v1748
      %1831 = vmatpush.xpose.msra.mxu0 %v1745
      %1832 = vmatpush.xpose.msra.mxu0 %v1742
      %1833 = vmatpush.xpose.msra.mxu0 %v1739
      %1834 = vmatmul.f32.gmra.mxu0 %v1688
      %v1835 = vpop.f32.mrf.mxu0
      %v1836 = vadd.f32 0.0, %v1835
      %1837 = vdwg.mxu0
      %1838 = vmatpush.xpose.msra.mxu0 0.0
      %1839 = vmatpush.xpose.msra.mxu0 0.0
      %1840 = vmatpush.xpose.msra.mxu0 0.0
      %1841 = vmatpush.xpose.msra.mxu0 0.0
      %1842 = vmatpush.xpose.msra.mxu0 0.0
      %1843 = vmatpush.xpose.msra.mxu0 0.0
      %1844 = vmatpush.xpose.msra.mxu0 0.0
      %1845 = vmatpush.xpose.msra.mxu0 0.0
      %1846 = vmatpush.xpose.msra.mxu0 0.0
      %1847 = vmatpush.xpose.msra.mxu0 0.0
      %1848 = vmatpush.xpose.msra.mxu0 0.0
      %1849 = vmatpush.xpose.msra.mxu0 0.0
      %1850 = vmatpush.xpose.msra.mxu0 %v1796
      %1851 = vmatpush.xpose.msra.mxu0 %v1793
      %1852 = vmatpush.xpose.msra.mxu0 %v1790
      %1853 = vmatpush.xpose.msra.mxu0 %v1787
      %1854 = vmatmul.f32.gmra.mxu0 %v1688
      %v1855 = vpop.f32.mrf.mxu0
      %v1856 = vadd.f32 0.0, %v1855
      %1857 = vdwg.mxu0
      %v1858 = vadd.f32 %v1646, %v1816
      %v1859 = vadd.f32 %v1647, %v1836
      %v1860 = vadd.f32 %v1648, %v1856
      %v1861 = vld [vmem:[%s165 + $0x26] sm:$0xff]
      %v1862 = vld [vmem:[%s165 + $0x2e] sm:$0xff]
      %v1863 = vld [vmem:[%s165 + $0x36] sm:$0xff]
      %v1864 = vld [vmem:[%s165 + $0x3e] sm:$0xff]
      %v1865 = vld [vmem:[%s165 + $0x46] sm:$0xff]
      %v1866 = vld [vmem:[%s165 + $0x4e] sm:$0xff]
      %v1867 = vld [vmem:[%s165 + $0x56] sm:$0xff]
      %v1868 = vld [vmem:[%s165 + $0x5e] sm:$0xff]
      %v1869 = vld [vmem:[%s165 + $0x66] sm:$0xff]
      %v1870 = vld [vmem:[%s165 + $0x6e] sm:$0xff]
      %v1871 = vld [vmem:[%s165 + $0x76] sm:$0xff]
      %v1872 = vld [vmem:[%s165 + $0x7e] sm:$0xff]
      %v1873 = vld [vmem:[%s165 + $0x86] sm:$0xff]
      %v1874 = vld [vmem:[%s165 + $0x8e] sm:$0xff]
      %v1875 = vld [vmem:[%s165 + $0x96] sm:$0xff]
      %v1876 = vld [vmem:[%s165 + $0x9e] sm:$0xff]
      %v1877 = vld [vmem:[%s165 + $0xa6] sm:$0xff]
      %v1878 = vld [vmem:[%s165 + $0xae] sm:$0xff]
      %v1879 = vld [vmem:[%s165 + $0xb6] sm:$0xff]
      %v1880 = vld [vmem:[%s165 + $0xbe] sm:$0xff]
      %v1881 = vld [vmem:[%s165 + $0xc6] sm:$0xff]
      %v1882 = vld [vmem:[%s165 + $0xce] sm:$0xff]
      %v1883 = vld [vmem:[%s165 + $0xd6] sm:$0xff]
      %v1884 = vld [vmem:[%s165 + $0xde] sm:$0xff]
      %v1885 = vld [vmem:[%s165 + $0xe6] sm:$0xff]
      %v1886 = vld [vmem:[%s165 + $0xee] sm:$0xff]
      %v1887 = vld [vmem:[%s165 + $0xf6] sm:$0xff]
      %v1888 = vld [vmem:[%s165 + $0xfe] sm:$0xff]
      %v1889 = vld [vmem:[%s165 + $0x106] sm:$0xff]
      %v1890 = vld [vmem:[%s165 + $0x10e] sm:$0xff]
      %v1891 = vld [vmem:[%s165 + $0x116] sm:$0xff]
      %v1892 = vld [vmem:[%s165 + $0x11e] sm:$0xff]
      %v1893 = vld [vmem:[%s165 + $0x126] sm:$0xff]
      %v1894 = vld [vmem:[%s165 + $0x12e] sm:$0xff]
      %v1895 = vld [vmem:[%s165 + $0x136] sm:$0xff]
      %v1896 = vld [vmem:[%s165 + $0x13e] sm:$0xff]
      %s1897 = scalar_lea.vmem %s1, 64
      %v1898 = vld [vmem:[%s1897] sm:$0xff]
      %v1900 = vsel %vm246, %v1898, 0
      %v1903 = vsel %vm246, %v1861, 0
      %v1906 = vsel %vm246, %v1862, 0
      %v1909 = vsel %vm246, %v1863, 0
      %v1912 = vsel %vm246, %v1864, 0
      %v1915 = vsel %vm246, %v1865, 0
      %v1918 = vsel %vm246, %v1866, 0
      %v1921 = vsel %vm246, %v1867, 0
      %v1924 = vsel %vm246, %v1868, 0
      %v1927 = vsel %vm246, %v1869, 0
      %v1930 = vsel %vm246, %v1870, 0
      %v1933 = vsel %vm246, %v1871, 0
      %v1936 = vsel %vm246, %v1872, 0
      %v1939 = vsel %vm246, %v1873, 0
      %v1942 = vsel %vm246, %v1874, 0
      %v1945 = vsel %vm246, %v1875, 0
      %v1948 = vsel %vm246, %v1876, 0
      %v1951 = vsel %vm246, %v1877, 0
      %v1954 = vsel %vm246, %v1878, 0
      %v1957 = vsel %vm246, %v1879, 0
      %v1960 = vsel %vm246, %v1880, 0
      %v1963 = vsel %vm246, %v1881, 0
      %v1966 = vsel %vm246, %v1882, 0
      %v1969 = vsel %vm246, %v1883, 0
      %v1972 = vsel %vm246, %v1884, 0
      %v1975 = vsel %vm246, %v1885, 0
      %v1978 = vsel %vm246, %v1886, 0
      %v1981 = vsel %vm246, %v1887, 0
      %v1984 = vsel %vm246, %v1888, 0
      %v1987 = vsel %vm246, %v1889, 0
      %v1990 = vsel %vm246, %v1890, 0
      %v1993 = vsel %vm246, %v1891, 0
      %v1996 = vsel %vm246, %v1892, 0
      %v1999 = vsel %vm246, %v1893, 0
      %v2002 = vsel %vm246, %v1894, 0
      %v2005 = vsel %vm246, %v1895, 0
      %v2008 = vsel %vm246, %v1896, 0
      %2010 = vmatpush.xpose.msra.mxu0 %v1948
      %2011 = vmatpush.xpose.msra.mxu0 %v1945
      %2012 = vmatpush.xpose.msra.mxu0 %v1942
      %2013 = vmatpush.xpose.msra.mxu0 %v1939
      %2014 = vmatpush.xpose.msra.mxu0 %v1936
      %2015 = vmatpush.xpose.msra.mxu0 %v1933
      %2016 = vmatpush.xpose.msra.mxu0 %v1930
      %2017 = vmatpush.xpose.msra.mxu0 %v1927
      %2018 = vmatpush.xpose.msra.mxu0 %v1924
      %2019 = vmatpush.xpose.msra.mxu0 %v1921
      %2020 = vmatpush.xpose.msra.mxu0 %v1918
      %2021 = vmatpush.xpose.msra.mxu0 %v1915
      %2022 = vmatpush.xpose.msra.mxu0 %v1912
      %2023 = vmatpush.xpose.msra.mxu0 %v1909
      %2024 = vmatpush.xpose.msra.mxu0 %v1906
      %2025 = vmatpush.xpose.msra.mxu0 %v1903
      %2026 = vmatmul.f32.gmra.mxu0 %v1900
      %v2027 = vpop.f32.mrf.mxu0
      %v2028 = vadd.f32 0.0, %v2027
      %2029 = vdwg.mxu0
      %2030 = vmatpush.xpose.msra.mxu0 %v1996
      %2031 = vmatpush.xpose.msra.mxu0 %v1993
      %2032 = vmatpush.xpose.msra.mxu0 %v1990
      %2033 = vmatpush.xpose.msra.mxu0 %v1987
      %2034 = vmatpush.xpose.msra.mxu0 %v1984
      %2035 = vmatpush.xpose.msra.mxu0 %v1981
      %2036 = vmatpush.xpose.msra.mxu0 %v1978
      %2037 = vmatpush.xpose.msra.mxu0 %v1975
      %2038 = vmatpush.xpose.msra.mxu0 %v1972
      %2039 = vmatpush.xpose.msra.mxu0 %v1969
      %2040 = vmatpush.xpose.msra.mxu0 %v1966
      %2041 = vmatpush.xpose.msra.mxu0 %v1963
      %2042 = vmatpush.xpose.msra.mxu0 %v1960
      %2043 = vmatpush.xpose.msra.mxu0 %v1957
      %2044 = vmatpush.xpose.msra.mxu0 %v1954
      %2045 = vmatpush.xpose.msra.mxu0 %v1951
      %2046 = vmatmul.f32.gmra.mxu0 %v1900
      %v2047 = vpop.f32.mrf.mxu0
      %v2048 = vadd.f32 0.0, %v2047
      %2049 = vdwg.mxu0
      %2050 = vmatpush.xpose.msra.mxu0 0.0
      %2051 = vmatpush.xpose.msra.mxu0 0.0
      %2052 = vmatpush.xpose.msra.mxu0 0.0
      %2053 = vmatpush.xpose.msra.mxu0 0.0
      %2054 = vmatpush.xpose.msra.mxu0 0.0
      %2055 = vmatpush.xpose.msra.mxu0 0.0
      %2056 = vmatpush.xpose.msra.mxu0 0.0
      %2057 = vmatpush.xpose.msra.mxu0 0.0
      %2058 = vmatpush.xpose.msra.mxu0 0.0
      %2059 = vmatpush.xpose.msra.mxu0 0.0
      %2060 = vmatpush.xpose.msra.mxu0 0.0
      %2061 = vmatpush.xpose.msra.mxu0 0.0
      %2062 = vmatpush.xpose.msra.mxu0 %v2008
      %2063 = vmatpush.xpose.msra.mxu0 %v2005
      %2064 = vmatpush.xpose.msra.mxu0 %v2002
      %2065 = vmatpush.xpose.msra.mxu0 %v1999
      %2066 = vmatmul.f32.gmra.mxu0 %v1900
      %v2067 = vpop.f32.mrf.mxu0
      %v2068 = vadd.f32 0.0, %v2067
      %2069 = vdwg.mxu0
      %v2070 = vadd.f32 %v1858, %v2028
      %v2071 = vadd.f32 %v1859, %v2048
      %v2072 = vadd.f32 %v1860, %v2068
      %v2073 = vld [vmem:[%s2] sm:$0xff]
      %2075 = vset.pattern.permute.xlu0 0
      %2076 = vperm.xlu0 %2075, %v2073
      %v2077 = vpop.permute.xlu0 %2076
      %v2079 = vadd.f32 %v2070, %v2077
      %v2080 = vadd.f32 %v2071, %v2077
      %v2081 = vadd.f32 %v2072, %v2077
      %2082 = vst [vmem:[%s170] sm:$0xff] %v2079
      %2083 = vst [vmem:[%s170 + $0x8] sm:$0xff] %v2080
      %vm2084 = vcmask 261120
      %2085 = vst.msk [vmem:[%s170 + $0x10] sm:$0xff] %vm2084, %v2081
      %p2086 = scmp.lt.s32.totalorder %s14, 1
      %s2087 = scalar_select %p2086, %s14, 1
      %s2088 = smul.addr %s2087, 3
      %s2089 = smul.addr %s2088, 8
      %s2090 = scalar_lea.vmem %s3, %s2089
      // Predicated region
      $region33: #{conv_block_forward.1} parent=31 // pred_check
        %p2091 = pneg %p100
      $region34: #{conv_block_forward.1} parent=31 // pred_check_branch
        %2093 = sbr.rel (%p2091) target = $region36
      $region35: #{conv_block_forward.1} parent=31 // pred_region
        _
      $region36: #{conv_block_forward.1} parent=31 // pred_fallthru
        _
    $region32: #{conv_block_forward.1} parent=5 // pred_fallthru
      _
    %p2094 = scmp.le.s32.totalorder 2, %s9
    // Predicated region
    $region37: #{conv_block_forward.1} parent=5 // pred_check
      %p2095 = pneg %p2094
    $region38: #{conv_block_forward.1} parent=5 // pred_check_branch
      %2097 = sbr.rel (%p2095) target = $region40
    $region39: #{conv_block_forward.1} parent=5 // pred_region
      %s2098 = ssub.s32 %s9, 2
      // Predicated region
      $region41: #{conv_block_forward.1} parent=39 // pred_check
        %p2099 = pneg %p106
      $region42: #{conv_block_forward.1} parent=39 // pred_check_branch
        %2101 = sbr.rel (%p2099) target = $region44
      $region43: #{conv_block_forward.1} parent=39 // pred_region
        %p2102 = scmp.lt.s32.totalorder %s15, 1
        %s2103 = scalar_select %p2102, %s15, 1
        %s2104 = smul.addr %s2103, 3
        %s2105 = smul.addr %s2104, 8
        %s2106 = scalar_lea.vmem %s3, %s2105
      $region44: #{conv_block_forward.1} parent=39 // pred_fallthru
        _
    $region40: #{conv_block_forward.1} parent=5 // pred_fallthru
      _
  $region6: #{conv_block_forward.1} parent=0 // loop_footer
    %s13 = sadd.s32 1, %s9
  $region7: #{conv_block_forward.1} parent=0 // loop_footer_branch
    %8 = sbr.rel target = $region3
  $region8: #{conv_block_forward.1} parent=0 // loop_exit
    _

</llo_original>
